<compile_context>
chip_gen: v7x
topology: tpu7x:2x2x1
jax: 0.10.0
libtpu: 0.0.40
codegen_flags: <defaults>
</compile_context>

<pallas_src>
import functools

import jax
import jax.numpy as jnp
from jax import lax
from jax.experimental import pallas as pl
from jax.experimental.pallas import tpu as pltpu

_EPS = 1e-5
_LANE = 128
_TILE_CAP = 16384                      # max lane-tile width (multiple of 128)
_TILE_VMEM_BUDGET = 16 * 1024 * 1024   # target per-grid-step working set
_VMEM_LIMIT = 32 * 1024 * 1024         # explicit scoped-VMEM limit (all gens)
_CSPLIT = 2                            # split HW reduction across 2 slots (v7x megacore)


def _leaky_relu(x):
    return jnp.where(x >= 0, x, 0.2 * x)


def _stats_kernel(x_ref, w1_ref, b1_ref, w2_ref, b2_ref, sum_ref, ssq_ref,
                  *, hw, tile_hw, half, n_tiles):
    """Pass 1: accumulate per-channel sum / sumsq of h2 over the HW tiles.

    Grid is (core_split, batch, hw_tiles_per_split); the HW reduction axis is
    last.  Each (split, batch) pair owns its own (C2, 1) partial-sum slot.
    """
    c = pl.program_id(0)
    j = pl.program_id(2)

    @pl.when(j == 0)
    def _init():
        sum_ref[...] = jnp.zeros_like(sum_ref)
        ssq_ref[...] = jnp.zeros_like(ssq_ref)

    gj = c * half + j            # global HW-tile index handled by this step

    @pl.when(gj < n_tiles)       # overshoot steps (odd n_tiles) do nothing
    def _acc():
        x = x_ref[...]                                             # (Cin, TILE)
        h1 = _leaky_relu(
            jnp.dot(w1_ref[...], x, preferred_element_type=jnp.float32)
            + b1_ref[...])
        h2 = (jnp.dot(w2_ref[...], h1, preferred_element_type=jnp.float32)
              + b2_ref[...])

        def accum(v):
            sum_ref[...] += jnp.sum(v, axis=1, keepdims=True)
            ssq_ref[...] += jnp.sum(v * v, axis=1, keepdims=True)

        if hw % tile_hw != 0:
            # Ragged HW: the input is NOT padded at the XLA level, so lanes
            # past HW in the boundary block hold unspecified data.  Mask them
            # out -- but only on the last tile; full tiles accumulate unmasked
            # (no per-step iota/compare/select on the hot path).
            @pl.when(gj == n_tiles - 1)
            def _last_tile():
                col = gj * tile_hw + lax.broadcasted_iota(jnp.int32, h2.shape, 1)
                accum(jnp.where(col < hw, h2, 0.0))

            @pl.when(gj < n_tiles - 1)
            def _full_tile():
                accum(h2)
        else:
            accum(h2)


def _apply_kernel(x_ref, w1_ref, b1_ref, w2_ref, b2_ref, scale_ref, shift_ref,
                  w3_ref, b3_ref, o_ref):
    """Pass 2: full forward with BatchNorm folded into one per-channel FMA.

    On a ragged boundary tile the lanes past HW compute garbage, but every
    output column depends only on its own input column (1x1 convs), and the
    masked boundary store drops those lanes, so valid outputs are unaffected.
    """
    x = x_ref[...]                                                 # (Cin, TILE)
    h1 = _leaky_relu(
        jnp.dot(w1_ref[...], x, preferred_element_type=jnp.float32) + b1_ref[...])
    h2 = (jnp.dot(w2_ref[...], h1, preferred_element_type=jnp.float32)
          + b2_ref[...])
    h2 = _leaky_relu(h2 * scale_ref[...] + shift_ref[...])         # folded BatchNorm
    h3 = (jnp.dot(w3_ref[...], h2, preferred_element_type=jnp.float32)
          + b3_ref[...])
    # Exact sigmoid: exp overflow gives 1/(1+inf)=0, the correct limit.
    # (approx=True would ride the EUP, but the kernel is HBM-bound so this
    # VALU work is free filler; staying exact keeps the reference check tight.)
    o_ref[...] = pl.reciprocal(1.0 + jnp.exp(-h3), approx=False).astype(o_ref.dtype)


def pixel_discriminator(x_nchw, params, *, transport_dtype=None):
    """x_nchw: (N, C, H, W).  Returns (N, C, H, W) in the transport dtype.

    transport_dtype: dtype used for the big HBM arrays (x, output, matmul
    weights).  jnp.bfloat16 halves HBM traffic on this bandwidth-bound op at
    the cost of looser numerics; default keeps the input's dtype (f32 here).
    """
    w1, b1, w2, b2, gamma, beta, w3, b3 = params
    N, Cin, H, W = x_nchw.shape
    HW = H * W
    Cmid = w1.shape[0]        # nf
    C2 = w2.shape[0]          # 2 * nf

    tdt = jnp.dtype(transport_dtype) if transport_dtype is not None else x_nchw.dtype

    # NCHW -> (N, C, H*W): pure reshape (H*W contiguous per channel).
    # NO padding: ragged final HW tiles are handled in-kernel / by masked
    # boundary stores, saving a full extra read+write of x and of the output.
    x3 = x_nchw.reshape(N, Cin, HW).astype(tdt)

    # Lane-dense HW tiles, as large as fits a ~16 MiB per-step working set
    # (x + out double-buffered, plus f32 h1/h2/h3 intermediates).
    bytes_per_col = 4 * (5 * Cin + Cmid + C2)
    cap = max(_LANE,
              min(_TILE_CAP, (_TILE_VMEM_BUDGET // bytes_per_col) // _LANE * _LANE))
    tile_hw = min(cap, pl.cdiv(HW, _LANE) * _LANE)
    grid_hw = pl.cdiv(HW, tile_hw)            # total HW tiles
    half = pl.cdiv(grid_hw, _CSPLIT)          # HW tiles per reduction slot

    # Conv weights (out, in, 1, 1) -> (Cout, Cin) so each layer is W @ X;
    # biases / BN params as (Cout, 1) f32 columns broadcasting over lanes.
    w1_m = w1.reshape(Cmid, Cin).astype(tdt)
    w2_m = w2.reshape(C2, Cmid).astype(tdt)
    w3_m = w3.reshape(Cin, C2).astype(tdt)
    b1_c = b1.reshape(Cmid, 1).astype(jnp.float32)
    b2_c = b2.reshape(C2, 1).astype(jnp.float32)
    b3_c = b3.reshape(Cin, 1).astype(jnp.float32)

    # Full-array blocks with constant index_maps -> resident in VMEM across
    # all grid steps (no per-step re-DMA).
    def resident3(a):
        return pl.BlockSpec(a.shape, lambda c, n, j: (0,) * a.ndim)

    def resident2(a):
        return pl.BlockSpec(a.shape, lambda n, j: (0,) * a.ndim)

    # ---------------- pass 1: per-(slot, batch, channel) sum / sumsq --------
    # Leading 2-wide parallel axis splits the HW tiles so both v7x TensorCores
    # get work even when N is small.  Overshoot steps (odd grid_hw) clamp
    # their block index (duplicate, discarded read) and skip accumulation.
    x_spec1 = pl.BlockSpec(
        (None, Cin, tile_hw),
        lambda c, n, j: (n, 0, jnp.minimum(c * half + j, grid_hw - 1)))
    stats_spec = pl.BlockSpec((None, None, C2, 1), lambda c, n, j: (c, n, 0, 0))

    stats_sum, stats_ssq = pl.pallas_call(
        functools.partial(_stats_kernel, hw=HW, tile_hw=tile_hw,
                          half=half, n_tiles=grid_hw),
        out_shape=(jax.ShapeDtypeStruct((_CSPLIT, N, C2, 1), jnp.float32),
                   jax.ShapeDtypeStruct((_CSPLIT, N, C2, 1), jnp.float32)),
        grid=(_CSPLIT, N, half),
        in_specs=[x_spec1,
                  resident3(w1_m), resident3(b1_c),
                  resident3(w2_m), resident3(b2_c)],
        out_specs=(stats_spec, stats_spec),
        compiler_params=pltpu.CompilerParams(
            dimension_semantics=("parallel", "parallel", "arbitrary"),
            vmem_limit_bytes=_VMEM_LIMIT),
    )(x3, w1_m, b1_c, w2_m, b2_c)

    # ------------- fold BN (train mode, biased var, eps=1e-5) in plain JAX --
    count = jnp.float32(N * HW)
    mean = jnp.sum(stats_sum, axis=(0, 1)) / count                 # (C2, 1)
    # E[x^2] - mean^2 in f32: fine at these sizes; switch to centered
    # accumulation if |mean| >> std at very large N*HW.
    var = jnp.sum(stats_ssq, axis=(0, 1)) / count - mean * mean
    scale = gamma.reshape(C2, 1).astype(jnp.float32) * lax.rsqrt(var + _EPS)
    shift = beta.reshape(C2, 1).astype(jnp.float32) - mean * scale

    # ---------------- pass 2: folded BN + rest of the network ---------------
    x_spec2 = pl.BlockSpec((None, Cin, tile_hw), lambda n, j: (n, 0, j))
    out3 = pl.pallas_call(
        _apply_kernel,
        out_shape=jax.ShapeDtypeStruct((N, Cin, HW), tdt),
        grid=(N, grid_hw),
        in_specs=[x_spec2,
                  resident2(w1_m), resident2(b1_c),
                  resident2(w2_m), resident2(b2_c),
                  resident2(scale), resident2(shift),
                  resident2(w3_m), resident2(b3_c)],
        out_specs=pl.BlockSpec((None, Cin, tile_hw), lambda n, j: (n, 0, j)),
        compiler_params=pltpu.CompilerParams(
            dimension_semantics=("parallel", "parallel"),
            vmem_limit_bytes=_VMEM_LIMIT),
    )(x3, w1_m, b1_c, w2_m, b2_c, scale, shift, w3_m, b3_c)

    # Restore (N, C, H, W): pure reshape, no slice, no transpose.
    return out3.reshape(N, Cin, H, W)


def _reference(x_nchw, params):
    """Pure-JAX reference matching PyTorch semantics (train-mode BN)."""
    w1, b1, w2, b2, gamma, beta, w3, b3 = params
    N, C, H, W = x_nchw.shape
    x = jnp.transpose(x_nchw, (0, 2, 3, 1)).reshape(-1, C)
    h1 = x @ w1.reshape(w1.shape[0], -1).T + b1
    h1 = jnp.where(h1 >= 0, h1, 0.2 * h1)
    h2 = h1 @ w2.reshape(w2.shape[0], -1).T + b2
    mean = jnp.mean(h2, axis=0, keepdims=True)
    var = jnp.mean((h2 - mean) ** 2, axis=0, keepdims=True)
    h2 = (h2 - mean) / jnp.sqrt(var + _EPS) * gamma + beta
    h2 = jnp.where(h2 >= 0, h2, 0.2 * h2)
    h3 = h2 @ w3.reshape(w3.shape[0], -1).T + b3
    y = jax.nn.sigmoid(h3)
    return jnp.transpose(y.reshape(N, H, W, C), (0, 3, 1, 2))


if __name__ == "__main__":
    # Small shapes consistent with the module: in_chn=4, nf=8, 16x16 images.
    N, in_chn, Hh, Ww = 2, 4, 16, 16
    nf = 8

    key = jax.random.PRNGKey(0)
    ks = jax.random.split(key, 9)
    params = (
        0.1 * jax.random.normal(ks[0], (nf, in_chn, 1, 1), jnp.float32),       # conv1 w
        0.1 * jax.random.normal(ks[1], (nf,), jnp.float32),                    # conv1 b
        0.1 * jax.random.normal(ks[2], (2 * nf, nf, 1, 1), jnp.float32),       # conv2 w
        0.1 * jax.random.normal(ks[3], (2 * nf,), jnp.float32),                # conv2 b
        1.0 + 0.1 * jax.random.normal(ks[4], (2 * nf,), jnp.float32),          # BN gamma
        0.1 * jax.random.normal(ks[5], (2 * nf,), jnp.float32),                # BN beta
        0.1 * jax.random.normal(ks[6], (in_chn, 2 * nf, 1, 1), jnp.float32),   # conv3 w
        0.1 * jax.random.normal(ks[7], (in_chn,), jnp.float32),                # conv3 b
    )
    x = jax.random.normal(ks[8], (N, in_chn, Hh, Ww), jnp.float32)

    fwd = jax.jit(pixel_discriminator)
    y = jax.block_until_ready(fwd(x, params))
    y_ref = jax.block_until_ready(_reference(x, params))

    assert y.shape == (N, in_chn, Hh, Ww)
    assert jnp.allclose(y, y_ref, atol=2e-5, rtol=2e-5), \
        float(jnp.max(jnp.abs(y - y_ref)))

    print("KERNEL_OK")
</pallas_src>

<mosaic_0001>
module attributes {stable_mosaic.version = 11 : i64} {
  func.func @_stats_kernel(%arg0: i32, %arg1: i32, %arg2: i32, %arg3: memref<1x4x256xf32, #tpu.memory_space<vmem>>, %arg4: memref<8x4xf32, #tpu.memory_space<vmem>>, %arg5: memref<8x1xf32, #tpu.memory_space<vmem>>, %arg6: memref<16x8xf32, #tpu.memory_space<vmem>>, %arg7: memref<16x1xf32, #tpu.memory_space<vmem>>, %arg8: memref<1x1x16x1xf32, #tpu.memory_space<vmem>>, %arg9: memref<1x1x16x1xf32, #tpu.memory_space<vmem>>) attributes {dimension_semantics = [#tpu.dimension_semantics<parallel>, #tpu.dimension_semantics<parallel>, #tpu.dimension_semantics<arbitrary>], iteration_bounds = array<i64: 2, 2, 1>, scalar_prefetch = 0 : i64, scratch_operands = 0 : i64, tpu.core_type = #tpu.core_type<tc>, window_params = [{transform_indices = @transform_0, window_bounds = array<i64: 1, 4, 256>}, {pipeline_mode = #tpu.pipeline_mode<synchronous>, transform_indices = @transform_1, window_bounds = array<i64: 8, 4>}, {pipeline_mode = #tpu.pipeline_mode<synchronous>, transform_indices = @transform_2, window_bounds = array<i64: 8, 1>}, {pipeline_mode = #tpu.pipeline_mode<synchronous>, transform_indices = @transform_3, window_bounds = array<i64: 16, 8>}, {pipeline_mode = #tpu.pipeline_mode<synchronous>, transform_indices = @transform_4, window_bounds = array<i64: 16, 1>}, {transform_indices = @transform_5, window_bounds = array<i64: 1, 1, 16, 1>}, {transform_indices = @transform_6, window_bounds = array<i64: 1, 1, 16, 1>}]} {
    %c0_i32 = arith.constant 0 : i32
    %0 = arith.cmpi eq, %arg2, %c0_i32 : i32
    %1 = arith.extui %0 : i1 to i32
    %c0_i32_0 = arith.constant 0 : i32
    %2 = arith.cmpi ne, %1, %c0_i32_0 : i32
    scf.if %2 {
      %cst = arith.constant 0.000000e+00 : f32
      %8 = vector.broadcast %cst : f32 to vector<16x1xf32>
      %c0 = arith.constant 0 : index
      %c0_3 = arith.constant 0 : index
      %c0_4 = arith.constant 0 : index
      %c0_5 = arith.constant 0 : index
      %9 = vector.load %arg8[%c0, %c0_3, %c0_4, %c0_5] : memref<1x1x16x1xf32, #tpu.memory_space<vmem>>, vector<1x1x16x1xf32>
      %10 = vector.shape_cast %9 : vector<1x1x16x1xf32> to vector<16x1xf32>
      %11 = vector.shape_cast %8 : vector<16x1xf32> to vector<1x1x16x1xf32>
      tpu.vector_store %arg8[%c0, %c0_3, %c0_4, %c0_5], %11 {strides = array<i32>} : memref<1x1x16x1xf32, #tpu.memory_space<vmem>>, vector<1x1x16x1xf32>,
      %cst_6 = arith.constant 0.000000e+00 : f32
      %12 = vector.broadcast %cst_6 : f32 to vector<16x1xf32>
      %c0_7 = arith.constant 0 : index
      %c0_8 = arith.constant 0 : index
      %c0_9 = arith.constant 0 : index
      %c0_10 = arith.constant 0 : index
      %13 = vector.load %arg9[%c0_7, %c0_8, %c0_9, %c0_10] : memref<1x1x16x1xf32, #tpu.memory_space<vmem>>, vector<1x1x16x1xf32>
      %14 = vector.shape_cast %13 : vector<1x1x16x1xf32> to vector<16x1xf32>
      %15 = vector.shape_cast %12 : vector<16x1xf32> to vector<1x1x16x1xf32>
      tpu.vector_store %arg9[%c0_7, %c0_8, %c0_9, %c0_10], %15 {strides = array<i32>} : memref<1x1x16x1xf32, #tpu.memory_space<vmem>>, vector<1x1x16x1xf32>,
    } else {
    }
    %c1_i32 = arith.constant 1 : i32
    %3 = arith.muli %arg0, %c1_i32 : i32
    %4 = arith.addi %3, %arg2 : i32
    %c1_i32_1 = arith.constant 1 : i32
    %5 = arith.cmpi slt, %4, %c1_i32_1 : i32
    %6 = arith.extui %5 : i1 to i32
    %c0_i32_2 = arith.constant 0 : i32
    %7 = arith.cmpi ne, %6, %c0_i32_2 : i32
    scf.if %7 {
      %c0 = arith.constant 0 : index
      %c0_3 = arith.constant 0 : index
      %c0_4 = arith.constant 0 : index
      %8 = vector.load %arg3[%c0, %c0_3, %c0_4] : memref<1x4x256xf32, #tpu.memory_space<vmem>>, vector<1x4x256xf32>
      %9 = vector.shape_cast %8 : vector<1x4x256xf32> to vector<4x256xf32>
      %c0_5 = arith.constant 0 : index
      %c0_6 = arith.constant 0 : index
      %10 = vector.load %arg4[%c0_5, %c0_6] : memref<8x4xf32, #tpu.memory_space<vmem>>, vector<8x4xf32>
      %cst = arith.constant dense<0.000000e+00> : vector<8x256xf32>
      %11 = tpu.matmul %10, %9, %cst {dimension_numbers = #tpu.dot_dimension_numbers<[1], [0], [0], [1], [0, 0, 1, 1], [], []>} : vector<8x4xf32>, vector<4x256xf32>, vector<8x256xf32> -> vector<8x256xf32>
      %c0_7 = arith.constant 0 : index
      %c0_8 = arith.constant 0 : index
      %12 = vector.load %arg5[%c0_7, %c0_8] : memref<8x1xf32, #tpu.memory_space<vmem>>, vector<8x1xf32>
      %13 = vector.broadcast %12 : vector<8x1xf32> to vector<8x256xf32>
      %14 = arith.addf %11, %13 : vector<8x256xf32>
      %cst_9 = arith.constant 0.000000e+00 : f32
      %15 = vector.broadcast %cst_9 : f32 to vector<8x256xf32>
      %16 = arith.cmpf oge, %14, %15 : vector<8x256xf32>
      %cst_10 = arith.constant 2.000000e-01 : f32
      %17 = vector.broadcast %cst_10 : f32 to vector<8x256xf32>
      %18 = arith.mulf %17, %14 : vector<8x256xf32>
      %19 = arith.select %16, %14, %18 : vector<8x256xi1>, vector<8x256xf32>
      %c0_11 = arith.constant 0 : index
      %c0_12 = arith.constant 0 : index
      %20 = vector.load %arg6[%c0_11, %c0_12] : memref<16x8xf32, #tpu.memory_space<vmem>>, vector<16x8xf32>
      %cst_13 = arith.constant dense<0.000000e+00> : vector<16x256xf32>
      %21 = tpu.matmul %20, %19, %cst_13 {dimension_numbers = #tpu.dot_dimension_numbers<[1], [0], [0], [1], [0, 0, 1, 1], [], []>} : vector<16x8xf32>, vector<8x256xf32>, vector<16x256xf32> -> vector<16x256xf32>
      %c0_14 = arith.constant 0 : index
      %c0_15 = arith.constant 0 : index
      %22 = vector.load %arg7[%c0_14, %c0_15] : memref<16x1xf32, #tpu.memory_space<vmem>>, vector<16x1xf32>
      %23 = vector.broadcast %22 : vector<16x1xf32> to vector<16x256xf32>
      %24 = arith.addf %21, %23 : vector<16x256xf32>
      %c0_16 = arith.constant 0 : index
      %c0_17 = arith.constant 0 : index
      %c0_18 = arith.constant 0 : index
      %c0_19 = arith.constant 0 : index
      %25 = vector.load %arg8[%c0_16, %c0_17, %c0_18, %c0_19] : memref<1x1x16x1xf32, #tpu.memory_space<vmem>>, vector<1x1x16x1xf32>
      %26 = vector.shape_cast %25 : vector<1x1x16x1xf32> to vector<16x1xf32>
      %cst_20 = arith.constant dense<0.000000e+00> : vector<16xf32>
      %27 = vector.multi_reduction <add>, %24, %cst_20 [1] : vector<16x256xf32> to vector<16xf32>
      %28 = vector.shape_cast %27 : vector<16xf32> to vector<16x1xf32>
      %29 = arith.addf %26, %28 : vector<16x1xf32>
      %c0_21 = arith.constant 0 : index
      %c0_22 = arith.constant 0 : index
      %c0_23 = arith.constant 0 : index
      %c0_24 = arith.constant 0 : index
      %30 = vector.load %arg8[%c0_21, %c0_22, %c0_23, %c0_24] : memref<1x1x16x1xf32, #tpu.memory_space<vmem>>, vector<1x1x16x1xf32>
      %31 = vector.shape_cast %30 : vector<1x1x16x1xf32> to vector<16x1xf32>
      %32 = vector.shape_cast %29 : vector<16x1xf32> to vector<1x1x16x1xf32>
      tpu.vector_store %arg8[%c0_21, %c0_22, %c0_23, %c0_24], %32 {strides = array<i32>} : memref<1x1x16x1xf32, #tpu.memory_space<vmem>>, vector<1x1x16x1xf32>,
      %c0_25 = arith.constant 0 : index
      %c0_26 = arith.constant 0 : index
      %c0_27 = arith.constant 0 : index
      %c0_28 = arith.constant 0 : index
      %33 = vector.load %arg9[%c0_25, %c0_26, %c0_27, %c0_28] : memref<1x1x16x1xf32, #tpu.memory_space<vmem>>, vector<1x1x16x1xf32>
      %34 = vector.shape_cast %33 : vector<1x1x16x1xf32> to vector<16x1xf32>
      %35 = arith.mulf %24, %24 : vector<16x256xf32>
      %cst_29 = arith.constant dense<0.000000e+00> : vector<16xf32>
      %36 = vector.multi_reduction <add>, %35, %cst_29 [1] : vector<16x256xf32> to vector<16xf32>
      %37 = vector.shape_cast %36 : vector<16xf32> to vector<16x1xf32>
      %38 = arith.addf %34, %37 : vector<16x1xf32>
      %c0_30 = arith.constant 0 : index
      %c0_31 = arith.constant 0 : index
      %c0_32 = arith.constant 0 : index
      %c0_33 = arith.constant 0 : index
      %39 = vector.load %arg9[%c0_30, %c0_31, %c0_32, %c0_33] : memref<1x1x16x1xf32, #tpu.memory_space<vmem>>, vector<1x1x16x1xf32>
      %40 = vector.shape_cast %39 : vector<1x1x16x1xf32> to vector<16x1xf32>
      %41 = vector.shape_cast %38 : vector<16x1xf32> to vector<1x1x16x1xf32>
      tpu.vector_store %arg9[%c0_30, %c0_31, %c0_32, %c0_33], %41 {strides = array<i32>} : memref<1x1x16x1xf32, #tpu.memory_space<vmem>>, vector<1x1x16x1xf32>,
    } else {
    }
    return
  }
  func.func @transform_0(%arg0: i32, %arg1: i32, %arg2: i32) -> (i32, i32, i32) {
    %c1_i32 = arith.constant 1 : i32
    %0 = arith.muli %arg0, %c1_i32 : i32
    %1 = arith.addi %0, %arg2 : i32
    %c0_i32 = arith.constant 0 : i32
    %2 = arith.minsi %1, %c0_i32 : i32
    %c0_i32_0 = arith.constant 0 : i32
    %c0_i32_1 = arith.constant 0 : i32
    return %arg1, %c0_i32_0, %2 : i32, i32, i32
  }
  func.func @transform_1(%arg0: i32, %arg1: i32, %arg2: i32) -> (i32, i32) {
    %c0_i32 = arith.constant 0 : i32
    %c0_i32_0 = arith.constant 0 : i32
    %c0_i32_1 = arith.constant 0 : i32
    return %c0_i32, %c0_i32_0 : i32, i32
  }
  func.func @transform_2(%arg0: i32, %arg1: i32, %arg2: i32) -> (i32, i32) {
    %c0_i32 = arith.constant 0 : i32
    %c0_i32_0 = arith.constant 0 : i32
    %c0_i32_1 = arith.constant 0 : i32
    return %c0_i32, %c0_i32_0 : i32, i32
  }
  func.func @transform_3(%arg0: i32, %arg1: i32, %arg2: i32) -> (i32, i32) {
    %c0_i32 = arith.constant 0 : i32
    %c0_i32_0 = arith.constant 0 : i32
    %c0_i32_1 = arith.constant 0 : i32
    return %c0_i32, %c0_i32_0 : i32, i32
  }
  func.func @transform_4(%arg0: i32, %arg1: i32, %arg2: i32) -> (i32, i32) {
    %c0_i32 = arith.constant 0 : i32
    %c0_i32_0 = arith.constant 0 : i32
    %c0_i32_1 = arith.constant 0 : i32
    return %c0_i32, %c0_i32_0 : i32, i32
  }
  func.func @transform_5(%arg0: i32, %arg1: i32, %arg2: i32) -> (i32, i32, i32, i32) {
    %c0_i32 = arith.constant 0 : i32
    %c0_i32_0 = arith.constant 0 : i32
    %c0_i32_1 = arith.constant 0 : i32
    return %arg0, %arg1, %c0_i32, %c0_i32_0 : i32, i32, i32, i32
  }
  func.func @transform_6(%arg0: i32, %arg1: i32, %arg2: i32) -> (i32, i32, i32, i32) {
    %c0_i32 = arith.constant 0 : i32
    %c0_i32_0 = arith.constant 0 : i32
    %c0_i32_1 = arith.constant 0 : i32
    return %arg0, %arg1, %c0_i32, %c0_i32_0 : i32, i32, i32, i32
  }
}

module attributes {stable_mosaic.version = 11 : i64} {
  func.func @_apply_kernel(%arg0: i32, %arg1: i32, %arg2: memref<1x4x256xf32, #tpu.memory_space<vmem>>, %arg3: memref<8x4xf32, #tpu.memory_space<vmem>>, %arg4: memref<8x1xf32, #tpu.memory_space<vmem>>, %arg5: memref<16x8xf32, #tpu.memory_space<vmem>>, %arg6: memref<16x1xf32, #tpu.memory_space<vmem>>, %arg7: memref<16x1xf32, #tpu.memory_space<vmem>>, %arg8: memref<16x1xf32, #tpu.memory_space<vmem>>, %arg9: memref<4x16xf32, #tpu.memory_space<vmem>>, %arg10: memref<4x1xf32, #tpu.memory_space<vmem>>, %arg11: memref<1x4x256xf32, #tpu.memory_space<vmem>>) attributes {dimension_semantics = [#tpu.dimension_semantics<parallel>, #tpu.dimension_semantics<parallel>], iteration_bounds = array<i64: 2, 1>, scalar_prefetch = 0 : i64, scratch_operands = 0 : i64, tpu.core_type = #tpu.core_type<tc>, window_params = [{transform_indices = @transform_0, window_bounds = array<i64: 1, 4, 256>}, {pipeline_mode = #tpu.pipeline_mode<synchronous>, transform_indices = @transform_1, window_bounds = array<i64: 8, 4>}, {pipeline_mode = #tpu.pipeline_mode<synchronous>, transform_indices = @transform_2, window_bounds = array<i64: 8, 1>}, {pipeline_mode = #tpu.pipeline_mode<synchronous>, transform_indices = @transform_3, window_bounds = array<i64: 16, 8>}, {pipeline_mode = #tpu.pipeline_mode<synchronous>, transform_indices = @transform_4, window_bounds = array<i64: 16, 1>}, {pipeline_mode = #tpu.pipeline_mode<synchronous>, transform_indices = @transform_5, window_bounds = array<i64: 16, 1>}, {pipeline_mode = #tpu.pipeline_mode<synchronous>, transform_indices = @transform_6, window_bounds = array<i64: 16, 1>}, {pipeline_mode = #tpu.pipeline_mode<synchronous>, transform_indices = @transform_7, window_bounds = array<i64: 4, 16>}, {pipeline_mode = #tpu.pipeline_mode<synchronous>, transform_indices = @transform_8, window_bounds = array<i64: 4, 1>}, {transform_indices = @transform_9, window_bounds = array<i64: 1, 4, 256>}]} {
    %c0 = arith.constant 0 : index
    %c0_0 = arith.constant 0 : index
    %c0_1 = arith.constant 0 : index
    %0 = vector.load %arg2[%c0, %c0_0, %c0_1] : memref<1x4x256xf32, #tpu.memory_space<vmem>>, vector<1x4x256xf32>
    %1 = vector.shape_cast %0 : vector<1x4x256xf32> to vector<4x256xf32>
    %c0_2 = arith.constant 0 : index
    %c0_3 = arith.constant 0 : index
    %2 = vector.load %arg3[%c0_2, %c0_3] : memref<8x4xf32, #tpu.memory_space<vmem>>, vector<8x4xf32>
    %cst = arith.constant dense<0.000000e+00> : vector<8x256xf32>
    %3 = tpu.matmul %2, %1, %cst {dimension_numbers = #tpu.dot_dimension_numbers<[1], [0], [0], [1], [0, 0, 1, 1], [], []>} : vector<8x4xf32>, vector<4x256xf32>, vector<8x256xf32> -> vector<8x256xf32>
    %c0_4 = arith.constant 0 : index
    %c0_5 = arith.constant 0 : index
    %4 = vector.load %arg4[%c0_4, %c0_5] : memref<8x1xf32, #tpu.memory_space<vmem>>, vector<8x1xf32>
    %5 = vector.broadcast %4 : vector<8x1xf32> to vector<8x256xf32>
    %6 = arith.addf %3, %5 : vector<8x256xf32>
    %cst_6 = arith.constant 0.000000e+00 : f32
    %7 = vector.broadcast %cst_6 : f32 to vector<8x256xf32>
    %8 = arith.cmpf oge, %6, %7 : vector<8x256xf32>
    %cst_7 = arith.constant 2.000000e-01 : f32
    %9 = vector.broadcast %cst_7 : f32 to vector<8x256xf32>
    %10 = arith.mulf %9, %6 : vector<8x256xf32>
    %11 = arith.select %8, %6, %10 : vector<8x256xi1>, vector<8x256xf32>
    %c0_8 = arith.constant 0 : index
    %c0_9 = arith.constant 0 : index
    %12 = vector.load %arg5[%c0_8, %c0_9] : memref<16x8xf32, #tpu.memory_space<vmem>>, vector<16x8xf32>
    %cst_10 = arith.constant dense<0.000000e+00> : vector<16x256xf32>
    %13 = tpu.matmul %12, %11, %cst_10 {dimension_numbers = #tpu.dot_dimension_numbers<[1], [0], [0], [1], [0, 0, 1, 1], [], []>} : vector<16x8xf32>, vector<8x256xf32>, vector<16x256xf32> -> vector<16x256xf32>
    %c0_11 = arith.constant 0 : index
    %c0_12 = arith.constant 0 : index
    %14 = vector.load %arg6[%c0_11, %c0_12] : memref<16x1xf32, #tpu.memory_space<vmem>>, vector<16x1xf32>
    %15 = vector.broadcast %14 : vector<16x1xf32> to vector<16x256xf32>
    %16 = arith.addf %13, %15 : vector<16x256xf32>
    %c0_13 = arith.constant 0 : index
    %c0_14 = arith.constant 0 : index
    %17 = vector.load %arg7[%c0_13, %c0_14] : memref<16x1xf32, #tpu.memory_space<vmem>>, vector<16x1xf32>
    %18 = vector.broadcast %17 : vector<16x1xf32> to vector<16x256xf32>
    %19 = arith.mulf %16, %18 : vector<16x256xf32>
    %c0_15 = arith.constant 0 : index
    %c0_16 = arith.constant 0 : index
    %20 = vector.load %arg8[%c0_15, %c0_16] : memref<16x1xf32, #tpu.memory_space<vmem>>, vector<16x1xf32>
    %21 = vector.broadcast %20 : vector<16x1xf32> to vector<16x256xf32>
    %22 = arith.addf %19, %21 : vector<16x256xf32>
    %cst_17 = arith.constant 0.000000e+00 : f32
    %23 = vector.broadcast %cst_17 : f32 to vector<16x256xf32>
    %24 = arith.cmpf oge, %22, %23 : vector<16x256xf32>
    %cst_18 = arith.constant 2.000000e-01 : f32
    %25 = vector.broadcast %cst_18 : f32 to vector<16x256xf32>
    %26 = arith.mulf %25, %22 : vector<16x256xf32>
    %27 = arith.select %24, %22, %26 : vector<16x256xi1>, vector<16x256xf32>
    %c0_19 = arith.constant 0 : index
    %c0_20 = arith.constant 0 : index
    %28 = vector.load %arg9[%c0_19, %c0_20] : memref<4x16xf32, #tpu.memory_space<vmem>>, vector<4x16xf32>
    %cst_21 = arith.constant dense<0.000000e+00> : vector<4x256xf32>
    %29 = tpu.matmul %28, %27, %cst_21 {dimension_numbers = #tpu.dot_dimension_numbers<[1], [0], [0], [1], [0, 0, 1, 1], [], []>} : vector<4x16xf32>, vector<16x256xf32>, vector<4x256xf32> -> vector<4x256xf32>
    %c0_22 = arith.constant 0 : index
    %c0_23 = arith.constant 0 : index
    %30 = vector.load %arg10[%c0_22, %c0_23] : memref<4x1xf32, #tpu.memory_space<vmem>>, vector<4x1xf32>
    %31 = vector.broadcast %30 : vector<4x1xf32> to vector<4x256xf32>
    %32 = arith.addf %29, %31 : vector<4x256xf32>
    %cst_24 = arith.constant 0.000000e+00 : f32
    %33 = vector.broadcast %cst_24 : f32 to vector<4x256xf32>
    %34 = arith.subf %33, %32 : vector<4x256xf32>
    %35 = math.exp %34 : vector<4x256xf32>
    %cst_25 = arith.constant 1.000000e+00 : f32
    %36 = vector.broadcast %cst_25 : f32 to vector<4x256xf32>
    %37 = arith.addf %36, %35 : vector<4x256xf32>
    %38 = tpu.reciprocal %37 : vector<4x256xf32> -> vector<4x256xf32>
    %c0_26 = arith.constant 0 : index
    %c0_27 = arith.constant 0 : index
    %c0_28 = arith.constant 0 : index
    %39 = vector.load %arg11[%c0_26, %c0_27, %c0_28] : memref<1x4x256xf32, #tpu.memory_space<vmem>>, vector<1x4x256xf32>
    %40 = vector.shape_cast %39 : vector<1x4x256xf32> to vector<4x256xf32>
    %41 = vector.shape_cast %38 : vector<4x256xf32> to vector<1x4x256xf32>
    tpu.vector_store %arg11[%c0_26, %c0_27, %c0_28], %41 {strides = array<i32>} : memref<1x4x256xf32, #tpu.memory_space<vmem>>, vector<1x4x256xf32>,
    return
  }
  func.func @transform_0(%arg0: i32, %arg1: i32) -> (i32, i32, i32) {
    %c0_i32 = arith.constant 0 : i32
    %c0_i32_0 = arith.constant 0 : i32
    return %arg0, %c0_i32, %arg1 : i32, i32, i32
  }
  func.func @transform_1(%arg0: i32, %arg1: i32) -> (i32, i32) {
    %c0_i32 = arith.constant 0 : i32
    %c0_i32_0 = arith.constant 0 : i32
    %c0_i32_1 = arith.constant 0 : i32
    return %c0_i32, %c0_i32_0 : i32, i32
  }
  func.func @transform_2(%arg0: i32, %arg1: i32) -> (i32, i32) {
    %c0_i32 = arith.constant 0 : i32
    %c0_i32_0 = arith.constant 0 : i32
    %c0_i32_1 = arith.constant 0 : i32
    return %c0_i32, %c0_i32_0 : i32, i32
  }
  func.func @transform_3(%arg0: i32, %arg1: i32) -> (i32, i32) {
    %c0_i32 = arith.constant 0 : i32
    %c0_i32_0 = arith.constant 0 : i32
    %c0_i32_1 = arith.constant 0 : i32
    return %c0_i32, %c0_i32_0 : i32, i32
  }
  func.func @transform_4(%arg0: i32, %arg1: i32) -> (i32, i32) {
    %c0_i32 = arith.constant 0 : i32
    %c0_i32_0 = arith.constant 0 : i32
    %c0_i32_1 = arith.constant 0 : i32
    return %c0_i32, %c0_i32_0 : i32, i32
  }
  func.func @transform_5(%arg0: i32, %arg1: i32) -> (i32, i32) {
    %c0_i32 = arith.constant 0 : i32
    %c0_i32_0 = arith.constant 0 : i32
    %c0_i32_1 = arith.constant 0 : i32
    return %c0_i32, %c0_i32_0 : i32, i32
  }
  func.func @transform_6(%arg0: i32, %arg1: i32) -> (i32, i32) {
    %c0_i32 = arith.constant 0 : i32
    %c0_i32_0 = arith.constant 0 : i32
    %c0_i32_1 = arith.constant 0 : i32
    return %c0_i32, %c0_i32_0 : i32, i32
  }
  func.func @transform_7(%arg0: i32, %arg1: i32) -> (i32, i32) {
    %c0_i32 = arith.constant 0 : i32
    %c0_i32_0 = arith.constant 0 : i32
    %c0_i32_1 = arith.constant 0 : i32
    return %c0_i32, %c0_i32_0 : i32, i32
  }
  func.func @transform_8(%arg0: i32, %arg1: i32) -> (i32, i32) {
    %c0_i32 = arith.constant 0 : i32
    %c0_i32_0 = arith.constant 0 : i32
    %c0_i32_1 = arith.constant 0 : i32
    return %c0_i32, %c0_i32_0 : i32, i32
  }
  func.func @transform_9(%arg0: i32, %arg1: i32) -> (i32, i32, i32) {
    %c0_i32 = arith.constant 0 : i32
    %c0_i32_0 = arith.constant 0 : i32
    return %arg0, %c0_i32, %arg1 : i32, i32, i32
  }
}

</mosaic_0001>

<llo_original>
// kernel: pixel_discriminator.2
$region0: #{pixel_discriminator.2}
  #allocation0 [shape = 'u32[]', space=smem, size = 0x4, offset = 0x4, fixed_abs, tag = 'smem constant byte address 0x4 - core index']
  #allocation1 [shape = 'u32[144,128]{1,0:T(1,128)}', space=vmem, size = 0x12000, scoped, tag = 'internal scratch']
  %s0 = inlined_call_operand.vmem [shape: f32[2,4,256], index: 0, kind: input, shape index: {}]
  %s1 = inlined_call_operand.vmem [shape: f32[8,4], index: 1, kind: input, shape index: {}]
  %s2 = inlined_call_operand.vmem [shape: f32[8,1], index: 2, kind: input, shape index: {}]
  %s3 = inlined_call_operand.vmem [shape: f32[16,8], index: 3, kind: input, shape index: {}]
  %s4 = inlined_call_operand.vmem [shape: f32[16,1], index: 4, kind: input, shape index: {}]
  %s5 = inlined_call_operand.vmem [shape: f32[2,2,16,1], index: 5, kind: output, shape index: {0}]
  %s6 = inlined_call_operand.vmem [shape: f32[2,2,16,1], index: 6, kind: output, shape index: {1}]
  %7 = xla_tuple %s5, %s6
  %s8 = sld [smem:[#allocation0]]
  $region69: #{pixel_discriminator.2} parent=0
    _
  %s10 = ssub.s32 1, %s8
  %s11 = scalar_select 0, %s10, %s8
  loop: start=0, step=1, limit=6
  $region2: #{pixel_discriminator.2} parent=0 // loop_pre_header
    _
  $region3: #{pixel_discriminator.2} parent=0 // loop_header
    %s13 = sphi 0, %s17
    %p14 = scmp.ge.s32.totalorder %s13, 6
    %s20 = sphi 0, %s39
    %s21 = sphi 0, %s35
    %s22 = sphi 0, %s31
    %s23 = sphi 0, %s20
    %s24 = sphi 0, %s21
    %s25 = sphi 0, %s22
    %s26 = sphi 0, %s23
    %s27 = sphi 0, %s24
    %s28 = sphi 0, %s25
    %s50 = sphi 0, %s52
    %s53 = sphi 0, %s50
    %s54 = sphi 0, %s53
    %s70 = sphi 0, %s54
    %s74 = sphi 0, %s74
    %s76 = sphi 0, %s74
    %s77 = sphi 0, %s76
    %s91 = sphi 0, %s77
    %s95 = sphi 0, %s95
    %s97 = sphi 0, %s95
    %s98 = sphi 0, %s97
    %s112 = sphi 0, %s98
    %s116 = sphi 0, %s116
    %s118 = sphi 0, %s116
    %s119 = sphi 0, %s118
    %s133 = sphi 0, %s119
    %s137 = sphi 0, %s137
    %s139 = sphi 0, %s137
    %s140 = sphi 0, %s139
    %s154 = sphi 0, %s140
    %s162 = sphi 0, %s164
    %s165 = sphi 0, %s162
    %s166 = sphi 0, %s165
    %s182 = sphi 0, %s166
    %s190 = sphi 0, %s192
    %s193 = sphi 0, %s190
    %s194 = sphi 0, %s193
    %s210 = sphi 0, %s194
  $region4: #{pixel_discriminator.2} parent=0 // loop_header_branch
    %16 = sbr.rel (%p14) target = $region8
  $region5: #{pixel_discriminator.2} parent=0 // loop_body
    %s18 = ssub.s32 %s13, 1
    %s19 = ssub.s32 %s13, 2
    %s29 = sadd.s32 1, %s22
    %p30 = scmp.ge.s32.totalorder %s29, 1
    %s31 = scalar_select %p30, 0, %s29
    %s32 = sadd.s32 1, %s21
    %s33 = scalar_select %p30, %s32, %s21
    %p34 = scmp.ge.s32.totalorder %s33, 2
    %s35 = scalar_select %p34, 0, %s33
    %s36 = sadd.s32 1, %s20
    %s37 = scalar_select %p34, %s36, %s20
    %p38 = scmp.ge.s32.totalorder %s37, 2
    %s39 = scalar_select %p38, 0, %s37
    %s40 = sadd.s32 %s20, %s22
    %p41 = scmp.lt.s32.totalorder %s40, 0
    %s42 = scalar_select %p41, %s40, 0
    %s43 = sadd.s32 %s39, %s31
    %p44 = scmp.lt.s32.totalorder %s43, 0
    %s45 = scalar_select %p44, %s43, 0
    %s46 = ssub.s32 %s21, %s35
    %s47 = ssub.s32 %s42, %s45
    %s48 = sor.u32 %s46, %s47
    %p49 = scmp.eq.s32.totalorder %s48, 0
    %s51 = sadd.s32 %s50, 1
    %s52 = scalar_select %p49, %s50, %s51
    %p55 = pneg %p49
    %p56 = scmp.eq.s32.totalorder %s13, 3
    %p57 = por %p55, %p56
    %p58 = scmp.ne.s32.totalorder %s50, %s53
    %p59 = scmp.eq.s32.totalorder %s13, 0
    %p60 = por %p58, %p59
    %p61 = scmp.ne.s32.totalorder %s50, %s53
    %p62 = scmp.eq.s32.totalorder %s18, 3
    %p63 = por %p61, %p62
    %p64 = scmp.ne.s32.totalorder %s53, %s54
    %p65 = scmp.eq.s32.totalorder %s18, 0
    %p66 = por %p64, %p65
    %p67 = scmp.ne.s32.totalorder %s53, %s54
    %p68 = scmp.eq.s32.totalorder %s19, 3
    %p69 = por %p67, %p68
    %p71 = scmp.ne.s32.totalorder %s54, %s70
    %p72 = scmp.eq.s32.totalorder %s19, 0
    %p73 = por %p71, %p72
    %s75 = sadd.s32 %s74, 1
    %p78 = scmp.eq.s32.totalorder %s13, 3
    %p79 = scmp.ne.s32.totalorder %s74, %s76
    %p80 = scmp.eq.s32.totalorder %s13, 0
    %p81 = por %p79, %p80
    %p82 = scmp.ne.s32.totalorder %s74, %s76
    %p83 = scmp.eq.s32.totalorder %s18, 3
    %p84 = por %p82, %p83
    %p85 = scmp.ne.s32.totalorder %s76, %s77
    %p86 = scmp.eq.s32.totalorder %s18, 0
    %p87 = por %p85, %p86
    %p88 = scmp.ne.s32.totalorder %s76, %s77
    %p89 = scmp.eq.s32.totalorder %s19, 3
    %p90 = por %p88, %p89
    %p92 = scmp.ne.s32.totalorder %s77, %s91
    %p93 = scmp.eq.s32.totalorder %s19, 0
    %p94 = por %p92, %p93
    %s96 = sadd.s32 %s95, 1
    %p99 = scmp.eq.s32.totalorder %s13, 3
    %p100 = scmp.ne.s32.totalorder %s95, %s97
    %p101 = scmp.eq.s32.totalorder %s13, 0
    %p102 = por %p100, %p101
    %p103 = scmp.ne.s32.totalorder %s95, %s97
    %p104 = scmp.eq.s32.totalorder %s18, 3
    %p105 = por %p103, %p104
    %p106 = scmp.ne.s32.totalorder %s97, %s98
    %p107 = scmp.eq.s32.totalorder %s18, 0
    %p108 = por %p106, %p107
    %p109 = scmp.ne.s32.totalorder %s97, %s98
    %p110 = scmp.eq.s32.totalorder %s19, 3
    %p111 = por %p109, %p110
    %p113 = scmp.ne.s32.totalorder %s98, %s112
    %p114 = scmp.eq.s32.totalorder %s19, 0
    %p115 = por %p113, %p114
    %s117 = sadd.s32 %s116, 1
    %p120 = scmp.eq.s32.totalorder %s13, 3
    %p121 = scmp.ne.s32.totalorder %s116, %s118
    %p122 = scmp.eq.s32.totalorder %s13, 0
    %p123 = por %p121, %p122
    %p124 = scmp.ne.s32.totalorder %s116, %s118
    %p125 = scmp.eq.s32.totalorder %s18, 3
    %p126 = por %p124, %p125
    %p127 = scmp.ne.s32.totalorder %s118, %s119
    %p128 = scmp.eq.s32.totalorder %s18, 0
    %p129 = por %p127, %p128
    %p130 = scmp.ne.s32.totalorder %s118, %s119
    %p131 = scmp.eq.s32.totalorder %s19, 3
    %p132 = por %p130, %p131
    %p134 = scmp.ne.s32.totalorder %s119, %s133
    %p135 = scmp.eq.s32.totalorder %s19, 0
    %p136 = por %p134, %p135
    %s138 = sadd.s32 %s137, 1
    %p141 = scmp.eq.s32.totalorder %s13, 3
    %p142 = scmp.ne.s32.totalorder %s137, %s139
    %p143 = scmp.eq.s32.totalorder %s13, 0
    %p144 = por %p142, %p143
    %p145 = scmp.ne.s32.totalorder %s137, %s139
    %p146 = scmp.eq.s32.totalorder %s18, 3
    %p147 = por %p145, %p146
    %p148 = scmp.ne.s32.totalorder %s139, %s140
    %p149 = scmp.eq.s32.totalorder %s18, 0
    %p150 = por %p148, %p149
    %p151 = scmp.ne.s32.totalorder %s139, %s140
    %p152 = scmp.eq.s32.totalorder %s19, 3
    %p153 = por %p151, %p152
    %p155 = scmp.ne.s32.totalorder %s140, %s154
    %p156 = scmp.eq.s32.totalorder %s19, 0
    %p157 = por %p155, %p156
    %s158 = ssub.s32 %s20, %s39
    %s159 = ssub.s32 %s21, %s35
    %s160 = sor.u32 %s158, %s159
    %p161 = scmp.eq.s32.totalorder %s160, 0
    %s163 = sadd.s32 %s162, 1
    %s164 = scalar_select %p161, %s162, %s163
    %p167 = pneg %p161
    %p168 = scmp.eq.s32.totalorder %s13, 3
    %p169 = por %p167, %p168
    %p170 = scmp.ne.s32.totalorder %s162, %s165
    %p171 = scmp.eq.s32.totalorder %s13, 0
    %p172 = por %p170, %p171
    %p173 = scmp.ne.s32.totalorder %s162, %s165
    %p174 = scmp.eq.s32.totalorder %s18, 3
    %p175 = por %p173, %p174
    %p176 = scmp.ne.s32.totalorder %s165, %s166
    %p177 = scmp.eq.s32.totalorder %s18, 0
    %p178 = por %p176, %p177
    %p179 = scmp.ne.s32.totalorder %s165, %s166
    %p180 = scmp.eq.s32.totalorder %s19, 3
    %p181 = por %p179, %p180
    %p183 = scmp.ne.s32.totalorder %s166, %s182
    %p184 = scmp.eq.s32.totalorder %s19, 0
    %p185 = por %p183, %p184
    %s186 = ssub.s32 %s20, %s39
    %s187 = ssub.s32 %s21, %s35
    %s188 = sor.u32 %s186, %s187
    %p189 = scmp.eq.s32.totalorder %s188, 0
    %s191 = sadd.s32 %s190, 1
    %s192 = scalar_select %p189, %s190, %s191
    %p195 = pneg %p189
    %p196 = scmp.eq.s32.totalorder %s13, 3
    %p197 = por %p195, %p196
    %p198 = scmp.ne.s32.totalorder %s190, %s193
    %p199 = scmp.eq.s32.totalorder %s13, 0
    %p200 = por %p198, %p199
    %p201 = scmp.ne.s32.totalorder %s190, %s193
    %p202 = scmp.eq.s32.totalorder %s18, 3
    %p203 = por %p201, %p202
    %p204 = scmp.ne.s32.totalorder %s193, %s194
    %p205 = scmp.eq.s32.totalorder %s18, 0
    %p206 = por %p204, %p205
    %p207 = scmp.ne.s32.totalorder %s193, %s194
    %p208 = scmp.eq.s32.totalorder %s19, 3
    %p209 = por %p207, %p208
    %p211 = scmp.ne.s32.totalorder %s194, %s210
    %p212 = scmp.eq.s32.totalorder %s19, 0
    %p213 = por %p211, %p212
    %p214 = scmp.le.s32.totalorder 1, %s13
    %p215 = scmp.lt.s32.totalorder %s13, 5
    %p216 = pnand %p214, %p215
    %p217 = pneg %p216
    // Predicated region
    $region9: #{pixel_discriminator.2} parent=5 // pred_check
      _
    $region10: #{pixel_discriminator.2} parent=5 // pred_check_branch
      %219 = sbr.rel (%p216) target = $region12
    $region11: #{pixel_discriminator.2} parent=5 // pred_region
      %s220 = ssub.s32 %s13, 1
      // Predicated region
      $region13: #{pixel_discriminator.2} parent=11 // pred_check
        %p221 = pneg %p87
      $region14: #{pixel_discriminator.2} parent=11 // pred_check_branch
        %223 = sbr.rel (%p221) target = $region16
      $region15: #{pixel_discriminator.2} parent=11 // pred_region
        _
      $region16: #{pixel_discriminator.2} parent=11 // pred_fallthru
        _
      // Predicated region
      $region17: #{pixel_discriminator.2} parent=11 // pred_check
        %p224 = pneg %p108
      $region18: #{pixel_discriminator.2} parent=11 // pred_check_branch
        %226 = sbr.rel (%p224) target = $region20
      $region19: #{pixel_discriminator.2} parent=11 // pred_region
        _
      $region20: #{pixel_discriminator.2} parent=11 // pred_fallthru
        _
      // Predicated region
      $region21: #{pixel_discriminator.2} parent=11 // pred_check
        %p227 = pneg %p129
      $region22: #{pixel_discriminator.2} parent=11 // pred_check_branch
        %229 = sbr.rel (%p227) target = $region24
      $region23: #{pixel_discriminator.2} parent=11 // pred_region
        _
      $region24: #{pixel_discriminator.2} parent=11 // pred_fallthru
        _
      // Predicated region
      $region25: #{pixel_discriminator.2} parent=11 // pred_check
        %p230 = pneg %p150
      $region26: #{pixel_discriminator.2} parent=11 // pred_check_branch
        %232 = sbr.rel (%p230) target = $region28
      $region27: #{pixel_discriminator.2} parent=11 // pred_region
        _
      $region28: #{pixel_discriminator.2} parent=11 // pred_fallthru
        _
    $region12: #{pixel_discriminator.2} parent=5 // pred_fallthru
      _
    %p233 = scmp.lt.s32.totalorder %s13, 4
    // Predicated region
    $region29: #{pixel_discriminator.2} parent=5 // pred_check
      %p234 = pneg %p233
    $region30: #{pixel_discriminator.2} parent=5 // pred_check_branch
      %236 = sbr.rel (%p234) target = $region32
    $region31: #{pixel_discriminator.2} parent=5 // pred_region
      // Predicated region
      $region33: #{pixel_discriminator.2} parent=31 // pred_check
        %p237 = pneg %p60
      $region34: #{pixel_discriminator.2} parent=31 // pred_check_branch
        %239 = sbr.rel (%p237) target = $region36
      $region35: #{pixel_discriminator.2} parent=31 // pred_region
        %s240 = sadd.s32 %s20, %s22
        %p241 = scmp.lt.s32.totalorder %s240, 0
        %s242 = scalar_select %p241, %s240, 0
        %s243 = smul.u32 2, %s242
        %p244 = scmp.lt.s32.totalorder %s21, 1
        %s245 = scalar_select %p244, %s21, 1
        %p246 = scmp.lt.s32.totalorder %s243, 1
        %s247 = scalar_select %p246, %s243, 1
        %s248 = smul.addr %s245, 2
        %s249 = sadd.s32 %s247, %s248
        %s250 = smul.addr %s249, 4
        %s251 = scalar_lea.vmem %s0, %s250
        %s252 = sadd.s32 %s20, %s22
        %p253 = scmp.lt.s32.totalorder %s252, 0
        %s254 = scalar_select %p253, %s252, 0
        %s255 = smul.u32 2, %s254
      $region36: #{pixel_discriminator.2} parent=31 // pred_fallthru
        _
    $region32: #{pixel_discriminator.2} parent=5 // pred_fallthru
      _
    %p256 = scmp.le.s32.totalorder 1, %s13
    %p257 = scmp.lt.s32.totalorder %s13, 5
    %p258 = pnand %p256, %p257
    %p259 = pneg %p258
    // Predicated region
    $region37: #{pixel_discriminator.2} parent=5 // pred_check
      _
    $region38: #{pixel_discriminator.2} parent=5 // pred_check_branch
      %261 = sbr.rel (%p258) target = $region40
    $region39: #{pixel_discriminator.2} parent=5 // pred_region
      %s262 = ssub.s32 %s13, 1
      %s263 = sadd.s32 %s23, %s25
      %p264 = scmp.lt.s32.totalorder %s263, 0
      %s265 = scalar_select %p264, %s263, 0
      %s266 = smul.u32 2, %s265
      %p267 = scmp.lt.s32.totalorder %s24, 1
      %s268 = scalar_select %p267, %s24, 1
      %p269 = scmp.lt.s32.totalorder %s266, 1
      %s270 = scalar_select %p269, %s266, 1
      %s271 = smul.addr %s268, 2
      %s272 = sadd.s32 %s270, %s271
      %s273 = smul.addr %s272, 4
      %s274 = scalar_lea.vmem %s0, %s273
      %p275 = pneg %p66
      %p276 = pneg %p63
      %p277 = pneg %p87
      %p278 = pneg %p84
      %p279 = pneg %p108
      %p280 = pneg %p105
      %p281 = pneg %p129
      %p282 = pneg %p126
      %p283 = pneg %p150
      %p284 = pneg %p147
      %p285 = pneg %p178
      %p286 = pneg %p175
      %p287 = scmp.lt.s32.totalorder %s23, 1
      %s288 = scalar_select %p287, %s23, 1
      %p289 = scmp.lt.s32.totalorder %s24, 1
      %s290 = scalar_select %p289, %s24, 1
      %s291 = smul.addr %s290, 2
      %s292 = smul.addr %s288, 4
      %s293 = sadd.s32 %s291, %s292
      %s294 = smul.addr %s293, 8
      %s295 = scalar_lea.vmem %s5, %s294
      %p296 = pneg %p206
      %p297 = pneg %p203
      %p298 = scmp.lt.s32.totalorder %s23, 1
      %s299 = scalar_select %p298, %s23, 1
      %p300 = scmp.lt.s32.totalorder %s24, 1
      %s301 = scalar_select %p300, %s24, 1
      %s302 = smul.addr %s301, 2
      %s303 = smul.addr %s299, 4
      %s304 = sadd.s32 %s302, %s303
      %s305 = smul.addr %s304, 8
      %s306 = scalar_lea.vmem %s6, %s305
      %s307 = sadd.s32 %s23, %s25
      %p308 = scmp.lt.s32.totalorder %s307, 0
      %s309 = scalar_select %p308, %s307, 0
      %s310 = smul.u32 2, %s309
      %p311 = scmp.lt.s32.totalorder %s24, 1
      %s312 = scalar_select %p311, %s24, 1
      %p313 = scmp.lt.s32.totalorder %s310, 1
      %s314 = scalar_select %p313, %s310, 1
      %s315 = smul.addr %s312, 2
      %s316 = sadd.s32 %s314, %s315
      %s317 = smul.addr %s316, 4
      %s318 = scalar_lea.vmem %s0, %s317
      %s319 = sadd.s32 %s23, %s25
      %p320 = scmp.lt.s32.totalorder %s319, 0
      %s321 = scalar_select %p320, %s319, 0
      %s322 = smul.u32 2, %s321
      %p323 = scmp.lt.s32.totalorder %s23, 1
      %s324 = scalar_select %p323, %s23, 1
      %p325 = scmp.lt.s32.totalorder %s24, 1
      %s326 = scalar_select %p325, %s24, 1
      %s327 = smul.addr %s326, 2
      %s328 = smul.addr %s324, 4
      %s329 = sadd.s32 %s327, %s328
      %s330 = smul.addr %s329, 8
      %s331 = scalar_lea.vmem %s5, %s330
      %p332 = scmp.lt.s32.totalorder %s23, 1
      %s333 = scalar_select %p332, %s23, 1
      %p334 = scmp.lt.s32.totalorder %s24, 1
      %s335 = scalar_select %p334, %s24, 1
      %s336 = smul.addr %s335, 2
      %s337 = smul.addr %s333, 4
      %s338 = sadd.s32 %s336, %s337
      %s339 = smul.addr %s338, 8
      %s340 = scalar_lea.vmem %s6, %s339
      %p341 = scmp.eq.s32.totalorder %s25, 0
      // Predicated region
      $region41: #{pixel_discriminator.2} parent=39 // pred_check
        %p342 = pneg %p341
      $region42: #{pixel_discriminator.2} parent=39 // pred_check_branch
        %344 = sbr.rel (%p342) target = $region44
      $region43: #{pixel_discriminator.2} parent=39 // pred_region
        %vm345 = vcmask 7168
        %346 = vst.msk [vmem:[%s331] sm:$0xff] %vm345, 0.0
        %347 = vst.msk [vmem:[%s331 + $0x8] sm:$0xff] %vm345, 0.0
        %348 = vst.msk [vmem:[%s340] sm:$0xff] %vm345, 0.0
        %349 = vst.msk [vmem:[%s340 + $0x8] sm:$0xff] %vm345, 0.0
      $region44: #{pixel_discriminator.2} parent=39 // pred_fallthru
        _
      %s350 = sadd.s32 %s23, %s25
      %p351 = scmp.lt.s32.totalorder %s350, 1
      // Predicated region
      $region45: #{pixel_discriminator.2} parent=39 // pred_check
        %p352 = pneg %p351
      $region46: #{pixel_discriminator.2} parent=39 // pred_check_branch
        %354 = sbr.rel (%p352) target = $region48
      $region47: #{pixel_discriminator.2} parent=39 // pred_region
        %v355 = vld [vmem:[%s318] sm:$0xff]
        %v356 = vld [vmem:[%s1] sm:$0xff]
        %v357 = vld [vmem:[%s2] sm:$0xff]
        %359 = vset.pattern.permute.xlu0 0
        %360 = vperm.xlu0 %359, %v357
        %v361 = vpop.permute.xlu0 %360
        %v364 = vcombine.high %v355, %v355
        %vm365 = vcmask 31744
        %v367 = vsel %vm365, %v356, 0
        %vm369 = vcmask 1043456
        %v370 = vsel %vm369, %v355, 0
        %v372 = vsel %vm369, %v364, 0
        %374 = vmatprep.subr.mxu0 %v372
        %375 = vmatpush1.msra.mxu0 %v370
        %376 = vmatprep.subr.mxu0 0.0
        %377 = vmatpush1.msra.mxu0 0.0
        %378 = vmatprep.subr.mxu0 0.0
        %379 = vmatpush1.msra.mxu0 0.0
        %380 = vmatprep.subr.mxu0 0.0
        %381 = vmatpush1.msra.mxu0 0.0
        %382 = vmatprep.subr.mxu0 0.0
        %383 = vmatpush1.msra.mxu0 0.0
        %384 = vmatprep.subr.mxu0 0.0
        %385 = vmatpush1.msra.mxu0 0.0
        %386 = vmatprep.subr.mxu0 0.0
        %387 = vmatpush1.msra.mxu0 0.0
        %388 = vmatprep.subr.mxu0 0.0
        %389 = vmatpush1.msra.mxu0 0.0
        %390 = vmatprep.subr.mxu0 0.0
        %391 = vmatpush1.msra.mxu0 0.0
        %392 = vmatprep.subr.mxu0 0.0
        %393 = vmatpush1.msra.mxu0 0.0
        %394 = vmatprep.subr.mxu0 0.0
        %395 = vmatpush1.msra.mxu0 0.0
        %396 = vmatprep.subr.mxu0 0.0
        %397 = vmatpush1.msra.mxu0 0.0
        %398 = vmatprep.subr.mxu0 0.0
        %399 = vmatpush1.msra.mxu0 0.0
        %400 = vmatprep.subr.mxu0 0.0
        %401 = vmatpush1.msra.mxu0 0.0
        %402 = vmatprep.subr.mxu0 0.0
        %403 = vmatpush1.msra.mxu0 0.0
        %404 = vmatprep.subr.mxu0 0.0
        %405 = vmatpush1.msra.mxu0 0.0
        %406 = vmatprep.subr.mxu0 0.0
        %407 = vmatpush1.msra.mxu0 0.0
        %408 = vmatprep.subr.mxu0 0.0
        %409 = vmatpush1.msra.mxu0 0.0
        %410 = vmatprep.subr.mxu0 0.0
        %411 = vmatpush1.msra.mxu0 0.0
        %412 = vmatprep.subr.mxu0 0.0
        %413 = vmatpush1.msra.mxu0 0.0
        %414 = vmatprep.subr.mxu0 0.0
        %415 = vmatpush1.msra.mxu0 0.0
        %416 = vmatprep.subr.mxu0 0.0
        %417 = vmatpush1.msra.mxu0 0.0
        %418 = vmatprep.subr.mxu0 0.0
        %419 = vmatpush1.msra.mxu0 0.0
        %420 = vmatprep.subr.mxu0 0.0
        %421 = vmatpush1.msra.mxu0 0.0
        %422 = vmatprep.subr.mxu0 0.0
        %423 = vmatpush1.msra.mxu0 0.0
        %424 = vmatprep.subr.mxu0 0.0
        %425 = vmatpush1.msra.mxu0 0.0
        %426 = vmatprep.subr.mxu0 0.0
        %427 = vmatpush1.msra.mxu0 0.0
        %428 = vmatprep.subr.mxu0 0.0
        %429 = vmatpush1.msra.mxu0 0.0
        %430 = vmatprep.subr.mxu0 0.0
        %431 = vmatpush1.msra.mxu0 0.0
        %432 = vmatprep.subr.mxu0 0.0
        %433 = vmatpush1.msra.mxu0 0.0
        %434 = vmatprep.subr.mxu0 0.0
        %435 = vmatpush1.msra.mxu0 0.0
        %436 = vmatprep.subr.mxu0 0.0
        %437 = vmatpush1.msra.mxu0 0.0
        %438 = vmatprep.mubr.f32.mxu0 0.0
        %439 = vmatmul.mubr.f32.gmra.mrb[0].mxu0 %v367
        %v440 = vpop.f32.mrb[0].mxu0
        %v441 = vadd.f32 %v361, %v440
        %v442 = vpop.f32.mrb[0].mxu0
        %v443 = vadd.f32 %v361, %v442
        %444 = vdwg.mxu0
        %vm445 = vcmp.ge.f32.partialorder %v441, 0.0
        %vm446 = vcmp.ge.f32.partialorder %v443, 0.0
        %v447 = vmul.f32 %v441, 0.2
        %v448 = vmul.f32 %v443, 0.2
        %v449 = vsel %vm445, %v441, %v447
        %v450 = vsel %vm446, %v443, %v448
        %v451 = vld [vmem:[%s3] sm:$0xff]
        %v452 = vld [vmem:[%s3 + $0x8] sm:$0xff]
        %v453 = vld [vmem:[%s4] sm:$0xff]
        %v454 = vld [vmem:[%s4 + $0x8] sm:$0xff]
        %456 = vset.pattern.permute.xlu0 0
        %457 = vperm.xlu0 %456, %v453
        %v458 = vpop.permute.xlu0 %457
        %461 = vset.pattern.permute.xlu0 0
        %462 = vperm.xlu0 %461, %v454
        %v463 = vpop.permute.xlu0 %462
        %vm465 = vcmask 64512
        %v467 = vsel %vm465, %v451, 0
        %v470 = vsel %vm465, %v452, 0
        %472 = vmatprep.subr.mxu0 %v450
        %473 = vmatpush1.msra.mxu0 %v449
        %474 = vmatprep.subr.mxu0 0.0
        %475 = vmatpush1.msra.mxu0 0.0
        %476 = vmatprep.subr.mxu0 0.0
        %477 = vmatpush1.msra.mxu0 0.0
        %478 = vmatprep.subr.mxu0 0.0
        %479 = vmatpush1.msra.mxu0 0.0
        %480 = vmatprep.subr.mxu0 0.0
        %481 = vmatpush1.msra.mxu0 0.0
        %482 = vmatprep.subr.mxu0 0.0
        %483 = vmatpush1.msra.mxu0 0.0
        %484 = vmatprep.subr.mxu0 0.0
        %485 = vmatpush1.msra.mxu0 0.0
        %486 = vmatprep.subr.mxu0 0.0
        %487 = vmatpush1.msra.mxu0 0.0
        %488 = vmatprep.subr.mxu0 0.0
        %489 = vmatpush1.msra.mxu0 0.0
        %490 = vmatprep.subr.mxu0 0.0
        %491 = vmatpush1.msra.mxu0 0.0
        %492 = vmatprep.subr.mxu0 0.0
        %493 = vmatpush1.msra.mxu0 0.0
        %494 = vmatprep.subr.mxu0 0.0
        %495 = vmatpush1.msra.mxu0 0.0
        %496 = vmatprep.subr.mxu0 0.0
        %497 = vmatpush1.msra.mxu0 0.0
        %498 = vmatprep.subr.mxu0 0.0
        %499 = vmatpush1.msra.mxu0 0.0
        %500 = vmatprep.subr.mxu0 0.0
        %501 = vmatpush1.msra.mxu0 0.0
        %502 = vmatprep.subr.mxu0 0.0
        %503 = vmatpush1.msra.mxu0 0.0
        %504 = vmatprep.subr.mxu0 0.0
        %505 = vmatpush1.msra.mxu0 0.0
        %506 = vmatprep.subr.mxu0 0.0
        %507 = vmatpush1.msra.mxu0 0.0
        %508 = vmatprep.subr.mxu0 0.0
        %509 = vmatpush1.msra.mxu0 0.0
        %510 = vmatprep.subr.mxu0 0.0
        %511 = vmatpush1.msra.mxu0 0.0
        %512 = vmatprep.subr.mxu0 0.0
        %513 = vmatpush1.msra.mxu0 0.0
        %514 = vmatprep.subr.mxu0 0.0
        %515 = vmatpush1.msra.mxu0 0.0
        %516 = vmatprep.subr.mxu0 0.0
        %517 = vmatpush1.msra.mxu0 0.0
        %518 = vmatprep.subr.mxu0 0.0
        %519 = vmatpush1.msra.mxu0 0.0
        %520 = vmatprep.subr.mxu0 0.0
        %521 = vmatpush1.msra.mxu0 0.0
        %522 = vmatprep.subr.mxu0 0.0
        %523 = vmatpush1.msra.mxu0 0.0
        %524 = vmatprep.subr.mxu0 0.0
        %525 = vmatpush1.msra.mxu0 0.0
        %526 = vmatprep.subr.mxu0 0.0
        %527 = vmatpush1.msra.mxu0 0.0
        %528 = vmatprep.subr.mxu0 0.0
        %529 = vmatpush1.msra.mxu0 0.0
        %530 = vmatprep.subr.mxu0 0.0
        %531 = vmatpush1.msra.mxu0 0.0
        %532 = vmatprep.subr.mxu0 0.0
        %533 = vmatpush1.msra.mxu0 0.0
        %534 = vmatprep.subr.mxu0 0.0
        %535 = vmatpush1.msra.mxu0 0.0
        %536 = vmatprep.mubr.f32.mxu0 0.0
        %537 = vmatmul.mubr.f32.gmra.mrb[0].mxu0 %v467
        %v538 = vpop.f32.mrb[0].mxu0
        %v539 = vadd.f32 %v458, %v538
        %v540 = vpop.f32.mrb[0].mxu0
        %v541 = vadd.f32 %v458, %v540
        %542 = vmatprep.mubr.f32.mxu0 0.0
        %543 = vmatmul.mubr.f32.gmra.mrb[0].mxu0 %v470
        %v544 = vpop.f32.mrb[0].mxu0
        %v545 = vadd.f32 %v463, %v544
        %v546 = vpop.f32.mrb[0].mxu0
        %v547 = vadd.f32 %v463, %v546
        %548 = vdwg.mxu0
        %v549 = vld [vmem:[%s331] sm:$0xff]
        %v550 = vld [vmem:[%s331 + $0x8] sm:$0xff]
        %v551 = vadd.f32 %v539, %v541
        %552 = vadd.xlane.f32.xlu0 %v551
        %v553 = vpop.xlane.xlu0 %552
        %v554 = vadd.f32 %v545, %v547
        %555 = vadd.xlane.f32.xlu0 %v554
        %v556 = vpop.xlane.xlu0 %555
        %v557 = vadd.f32 %v549, %v553
        %v558 = vadd.f32 %v550, %v556
        %vm559 = vcmask 7168
        %560 = vst.msk [vmem:[%s331] sm:$0xff] %vm559, %v557
        %561 = vst.msk [vmem:[%s331 + $0x8] sm:$0xff] %vm559, %v558
        %v562 = vld [vmem:[%s340] sm:$0xff]
        %v563 = vld [vmem:[%s340 + $0x8] sm:$0xff]
        %v564 = vmul.f32 %v539, %v539
        %v565 = vmul.f32 %v541, %v541
        %v566 = vmul.f32 %v545, %v545
        %v567 = vmul.f32 %v547, %v547
        %v568 = vadd.f32 %v564, %v565
        %569 = vadd.xlane.f32.xlu0 %v568
        %v570 = vpop.xlane.xlu0 %569
        %v571 = vadd.f32 %v566, %v567
        %572 = vadd.xlane.f32.xlu0 %v571
        %v573 = vpop.xlane.xlu0 %572
        %v574 = vadd.f32 %v562, %v570
        %v575 = vadd.f32 %v563, %v573
        %576 = vst.msk [vmem:[%s340] sm:$0xff] %vm559, %v574
        %577 = vst.msk [vmem:[%s340 + $0x8] sm:$0xff] %vm559, %v575
      $region48: #{pixel_discriminator.2} parent=39 // pred_fallthru
        _
      %p578 = scmp.lt.s32.totalorder %s23, 1
      %s579 = scalar_select %p578, %s23, 1
      %p580 = scmp.lt.s32.totalorder %s24, 1
      %s581 = scalar_select %p580, %s24, 1
      %s582 = smul.addr %s581, 2
      %s583 = smul.addr %s579, 4
      %s584 = sadd.s32 %s582, %s583
      %s585 = smul.addr %s584, 8
      %s586 = scalar_lea.vmem %s5, %s585
      %p587 = scmp.lt.s32.totalorder %s23, 1
      %s588 = scalar_select %p587, %s23, 1
      %p589 = scmp.lt.s32.totalorder %s24, 1
      %s590 = scalar_select %p589, %s24, 1
      %s591 = smul.addr %s590, 2
      %s592 = smul.addr %s588, 4
      %s593 = sadd.s32 %s591, %s592
      %s594 = smul.addr %s593, 8
      %s595 = scalar_lea.vmem %s6, %s594
      // Predicated region
      $region49: #{pixel_discriminator.2} parent=39 // pred_check
        %p596 = pneg %p175
      $region50: #{pixel_discriminator.2} parent=39 // pred_check_branch
        %598 = sbr.rel (%p596) target = $region52
      $region51: #{pixel_discriminator.2} parent=39 // pred_region
        _
      $region52: #{pixel_discriminator.2} parent=39 // pred_fallthru
        _
      // Predicated region
      $region53: #{pixel_discriminator.2} parent=39 // pred_check
        %p599 = pneg %p203
      $region54: #{pixel_discriminator.2} parent=39 // pred_check_branch
        %601 = sbr.rel (%p599) target = $region56
      $region55: #{pixel_discriminator.2} parent=39 // pred_region
        _
      $region56: #{pixel_discriminator.2} parent=39 // pred_fallthru
        _
    $region40: #{pixel_discriminator.2} parent=5 // pred_fallthru
      _
    %p602 = scmp.le.s32.totalorder 2, %s13
    // Predicated region
    $region57: #{pixel_discriminator.2} parent=5 // pred_check
      %p603 = pneg %p602
    $region58: #{pixel_discriminator.2} parent=5 // pred_check_branch
      %605 = sbr.rel (%p603) target = $region60
    $region59: #{pixel_discriminator.2} parent=5 // pred_region
      %s606 = ssub.s32 %s13, 2
      // Predicated region
      $region61: #{pixel_discriminator.2} parent=59 // pred_check
        %p607 = pneg %p181
      $region62: #{pixel_discriminator.2} parent=59 // pred_check_branch
        %609 = sbr.rel (%p607) target = $region64
      $region63: #{pixel_discriminator.2} parent=59 // pred_region
        %p610 = scmp.lt.s32.totalorder %s26, 1
        %s611 = scalar_select %p610, %s26, 1
        %p612 = scmp.lt.s32.totalorder %s27, 1
        %s613 = scalar_select %p612, %s27, 1
        %s614 = smul.addr %s613, 2
        %s615 = smul.addr %s611, 4
        %s616 = sadd.s32 %s614, %s615
        %s617 = smul.addr %s616, 8
        %s618 = scalar_lea.vmem %s5, %s617
      $region64: #{pixel_discriminator.2} parent=59 // pred_fallthru
        _
      // Predicated region
      $region65: #{pixel_discriminator.2} parent=59 // pred_check
        %p619 = pneg %p209
      $region66: #{pixel_discriminator.2} parent=59 // pred_check_branch
        %621 = sbr.rel (%p619) target = $region68
      $region67: #{pixel_discriminator.2} parent=59 // pred_region
        %p622 = scmp.lt.s32.totalorder %s26, 1
        %s623 = scalar_select %p622, %s26, 1
        %p624 = scmp.lt.s32.totalorder %s27, 1
        %s625 = scalar_select %p624, %s27, 1
        %s626 = smul.addr %s625, 2
        %s627 = smul.addr %s623, 4
        %s628 = sadd.s32 %s626, %s627
        %s629 = smul.addr %s628, 8
        %s630 = scalar_lea.vmem %s6, %s629
      $region68: #{pixel_discriminator.2} parent=59 // pred_fallthru
        _
    $region60: #{pixel_discriminator.2} parent=5 // pred_fallthru
      _
  $region6: #{pixel_discriminator.2} parent=0 // loop_footer
    %s17 = sadd.s32 1, %s13
  $region7: #{pixel_discriminator.2} parent=0 // loop_footer_branch
    %12 = sbr.rel target = $region3
  $region8: #{pixel_discriminator.2} parent=0 // loop_exit
    _

// kernel: pixel_discriminator.3
$region0: #{pixel_discriminator.3}
  #allocation0 [shape = 'u32[]', space=smem, size = 0x4, offset = 0x4, fixed_abs, tag = 'smem constant byte address 0x4 - core index']
  #allocation1 [shape = 'u32[144,128]{1,0:T(1,128)}', space=vmem, size = 0x12000, scoped, tag = 'internal scratch']
  %s0 = inlined_call_operand.vmem [shape: f32[2,4,256], index: 0, kind: input, shape index: {}]
  %s1 = inlined_call_operand.vmem [shape: f32[8,4], index: 1, kind: input, shape index: {}]
  %s2 = inlined_call_operand.vmem [shape: f32[8,1], index: 2, kind: input, shape index: {}]
  %s3 = inlined_call_operand.vmem [shape: f32[16,8], index: 3, kind: input, shape index: {}]
  %s4 = inlined_call_operand.vmem [shape: f32[16,1], index: 4, kind: input, shape index: {}]
  %s5 = inlined_call_operand.vmem [shape: f32[16,1], index: 5, kind: input, shape index: {}]
  %s6 = inlined_call_operand.vmem [shape: f32[16,1], index: 6, kind: input, shape index: {}]
  %s7 = inlined_call_operand.vmem [shape: f32[4,16], index: 7, kind: input, shape index: {}]
  %s8 = inlined_call_operand.vmem [shape: f32[4,1], index: 8, kind: input, shape index: {}]
  %s9 = inlined_call_operand.vmem [shape: f32[2,4,256], index: 9, kind: output, shape index: {}]
  %s10 = sld [smem:[#allocation0]]
  $region69: #{pixel_discriminator.3} parent=0
    _
  %s12 = ssub.s32 1, %s10
  %s13 = scalar_select 0, %s12, %s10
  loop: start=0, step=1, limit=4
  $region2: #{pixel_discriminator.3} parent=0 // loop_pre_header
    _
  $region3: #{pixel_discriminator.3} parent=0 // loop_header
    %s15 = sphi 0, %s19
    %p16 = scmp.ge.s32.totalorder %s15, 4
    %s22 = sphi 0, %s34
    %s23 = sphi 0, %s30
    %s24 = sphi 0, %s22
    %s25 = sphi 0, %s23
    %s26 = sphi 0, %s24
    %s27 = sphi 0, %s25
    %s39 = sphi 0, %s41
    %s42 = sphi 0, %s39
    %s43 = sphi 0, %s42
    %s59 = sphi 0, %s43
    %s63 = sphi 0, %s63
    %s65 = sphi 0, %s63
    %s66 = sphi 0, %s65
    %s80 = sphi 0, %s66
    %s84 = sphi 0, %s84
    %s86 = sphi 0, %s84
    %s87 = sphi 0, %s86
    %s101 = sphi 0, %s87
    %s105 = sphi 0, %s105
    %s107 = sphi 0, %s105
    %s108 = sphi 0, %s107
    %s122 = sphi 0, %s108
    %s126 = sphi 0, %s126
    %s128 = sphi 0, %s126
    %s129 = sphi 0, %s128
    %s143 = sphi 0, %s129
    %s147 = sphi 0, %s147
    %s149 = sphi 0, %s147
    %s150 = sphi 0, %s149
    %s164 = sphi 0, %s150
    %s168 = sphi 0, %s168
    %s170 = sphi 0, %s168
    %s171 = sphi 0, %s170
    %s185 = sphi 0, %s171
    %s189 = sphi 0, %s189
    %s191 = sphi 0, %s189
    %s192 = sphi 0, %s191
    %s206 = sphi 0, %s192
    %s210 = sphi 0, %s210
    %s212 = sphi 0, %s210
    %s213 = sphi 0, %s212
    %s227 = sphi 0, %s213
    %s235 = sphi 0, %s237
    %s238 = sphi 0, %s235
    %s239 = sphi 0, %s238
    %s255 = sphi 0, %s239
  $region4: #{pixel_discriminator.3} parent=0 // loop_header_branch
    %18 = sbr.rel (%p16) target = $region8
  $region5: #{pixel_discriminator.3} parent=0 // loop_body
    %s20 = ssub.s32 %s15, 1
    %s21 = ssub.s32 %s15, 2
    %s28 = sadd.s32 1, %s23
    %p29 = scmp.ge.s32.totalorder %s28, 1
    %s30 = scalar_select %p29, 0, %s28
    %s31 = sadd.s32 1, %s22
    %s32 = scalar_select %p29, %s31, %s22
    %p33 = scmp.ge.s32.totalorder %s32, 2
    %s34 = scalar_select %p33, 0, %s32
    %s35 = ssub.s32 %s22, %s34
    %s36 = ssub.s32 %s23, %s30
    %s37 = sor.u32 %s35, %s36
    %p38 = scmp.eq.s32.totalorder %s37, 0
    %s40 = sadd.s32 %s39, 1
    %s41 = scalar_select %p38, %s39, %s40
    %p44 = pneg %p38
    %p45 = scmp.eq.s32.totalorder %s15, 1
    %p46 = por %p44, %p45
    %p47 = scmp.ne.s32.totalorder %s39, %s42
    %p48 = scmp.eq.s32.totalorder %s15, 0
    %p49 = por %p47, %p48
    %p50 = scmp.ne.s32.totalorder %s39, %s42
    %p51 = scmp.eq.s32.totalorder %s20, 1
    %p52 = por %p50, %p51
    %p53 = scmp.ne.s32.totalorder %s42, %s43
    %p54 = scmp.eq.s32.totalorder %s20, 0
    %p55 = por %p53, %p54
    %p56 = scmp.ne.s32.totalorder %s42, %s43
    %p57 = scmp.eq.s32.totalorder %s21, 1
    %p58 = por %p56, %p57
    %p60 = scmp.ne.s32.totalorder %s43, %s59
    %p61 = scmp.eq.s32.totalorder %s21, 0
    %p62 = por %p60, %p61
    %s64 = sadd.s32 %s63, 1
    %p67 = scmp.eq.s32.totalorder %s15, 1
    %p68 = scmp.ne.s32.totalorder %s63, %s65
    %p69 = scmp.eq.s32.totalorder %s15, 0
    %p70 = por %p68, %p69
    %p71 = scmp.ne.s32.totalorder %s63, %s65
    %p72 = scmp.eq.s32.totalorder %s20, 1
    %p73 = por %p71, %p72
    %p74 = scmp.ne.s32.totalorder %s65, %s66
    %p75 = scmp.eq.s32.totalorder %s20, 0
    %p76 = por %p74, %p75
    %p77 = scmp.ne.s32.totalorder %s65, %s66
    %p78 = scmp.eq.s32.totalorder %s21, 1
    %p79 = por %p77, %p78
    %p81 = scmp.ne.s32.totalorder %s66, %s80
    %p82 = scmp.eq.s32.totalorder %s21, 0
    %p83 = por %p81, %p82
    %s85 = sadd.s32 %s84, 1
    %p88 = scmp.eq.s32.totalorder %s15, 1
    %p89 = scmp.ne.s32.totalorder %s84, %s86
    %p90 = scmp.eq.s32.totalorder %s15, 0
    %p91 = por %p89, %p90
    %p92 = scmp.ne.s32.totalorder %s84, %s86
    %p93 = scmp.eq.s32.totalorder %s20, 1
    %p94 = por %p92, %p93
    %p95 = scmp.ne.s32.totalorder %s86, %s87
    %p96 = scmp.eq.s32.totalorder %s20, 0
    %p97 = por %p95, %p96
    %p98 = scmp.ne.s32.totalorder %s86, %s87
    %p99 = scmp.eq.s32.totalorder %s21, 1
    %p100 = por %p98, %p99
    %p102 = scmp.ne.s32.totalorder %s87, %s101
    %p103 = scmp.eq.s32.totalorder %s21, 0
    %p104 = por %p102, %p103
    %s106 = sadd.s32 %s105, 1
    %p109 = scmp.eq.s32.totalorder %s15, 1
    %p110 = scmp.ne.s32.totalorder %s105, %s107
    %p111 = scmp.eq.s32.totalorder %s15, 0
    %p112 = por %p110, %p111
    %p113 = scmp.ne.s32.totalorder %s105, %s107
    %p114 = scmp.eq.s32.totalorder %s20, 1
    %p115 = por %p113, %p114
    %p116 = scmp.ne.s32.totalorder %s107, %s108
    %p117 = scmp.eq.s32.totalorder %s20, 0
    %p118 = por %p116, %p117
    %p119 = scmp.ne.s32.totalorder %s107, %s108
    %p120 = scmp.eq.s32.totalorder %s21, 1
    %p121 = por %p119, %p120
    %p123 = scmp.ne.s32.totalorder %s108, %s122
    %p124 = scmp.eq.s32.totalorder %s21, 0
    %p125 = por %p123, %p124
    %s127 = sadd.s32 %s126, 1
    %p130 = scmp.eq.s32.totalorder %s15, 1
    %p131 = scmp.ne.s32.totalorder %s126, %s128
    %p132 = scmp.eq.s32.totalorder %s15, 0
    %p133 = por %p131, %p132
    %p134 = scmp.ne.s32.totalorder %s126, %s128
    %p135 = scmp.eq.s32.totalorder %s20, 1
    %p136 = por %p134, %p135
    %p137 = scmp.ne.s32.totalorder %s128, %s129
    %p138 = scmp.eq.s32.totalorder %s20, 0
    %p139 = por %p137, %p138
    %p140 = scmp.ne.s32.totalorder %s128, %s129
    %p141 = scmp.eq.s32.totalorder %s21, 1
    %p142 = por %p140, %p141
    %p144 = scmp.ne.s32.totalorder %s129, %s143
    %p145 = scmp.eq.s32.totalorder %s21, 0
    %p146 = por %p144, %p145
    %s148 = sadd.s32 %s147, 1
    %p151 = scmp.eq.s32.totalorder %s15, 1
    %p152 = scmp.ne.s32.totalorder %s147, %s149
    %p153 = scmp.eq.s32.totalorder %s15, 0
    %p154 = por %p152, %p153
    %p155 = scmp.ne.s32.totalorder %s147, %s149
    %p156 = scmp.eq.s32.totalorder %s20, 1
    %p157 = por %p155, %p156
    %p158 = scmp.ne.s32.totalorder %s149, %s150
    %p159 = scmp.eq.s32.totalorder %s20, 0
    %p160 = por %p158, %p159
    %p161 = scmp.ne.s32.totalorder %s149, %s150
    %p162 = scmp.eq.s32.totalorder %s21, 1
    %p163 = por %p161, %p162
    %p165 = scmp.ne.s32.totalorder %s150, %s164
    %p166 = scmp.eq.s32.totalorder %s21, 0
    %p167 = por %p165, %p166
    %s169 = sadd.s32 %s168, 1
    %p172 = scmp.eq.s32.totalorder %s15, 1
    %p173 = scmp.ne.s32.totalorder %s168, %s170
    %p174 = scmp.eq.s32.totalorder %s15, 0
    %p175 = por %p173, %p174
    %p176 = scmp.ne.s32.totalorder %s168, %s170
    %p177 = scmp.eq.s32.totalorder %s20, 1
    %p178 = por %p176, %p177
    %p179 = scmp.ne.s32.totalorder %s170, %s171
    %p180 = scmp.eq.s32.totalorder %s20, 0
    %p181 = por %p179, %p180
    %p182 = scmp.ne.s32.totalorder %s170, %s171
    %p183 = scmp.eq.s32.totalorder %s21, 1
    %p184 = por %p182, %p183
    %p186 = scmp.ne.s32.totalorder %s171, %s185
    %p187 = scmp.eq.s32.totalorder %s21, 0
    %p188 = por %p186, %p187
    %s190 = sadd.s32 %s189, 1
    %p193 = scmp.eq.s32.totalorder %s15, 1
    %p194 = scmp.ne.s32.totalorder %s189, %s191
    %p195 = scmp.eq.s32.totalorder %s15, 0
    %p196 = por %p194, %p195
    %p197 = scmp.ne.s32.totalorder %s189, %s191
    %p198 = scmp.eq.s32.totalorder %s20, 1
    %p199 = por %p197, %p198
    %p200 = scmp.ne.s32.totalorder %s191, %s192
    %p201 = scmp.eq.s32.totalorder %s20, 0
    %p202 = por %p200, %p201
    %p203 = scmp.ne.s32.totalorder %s191, %s192
    %p204 = scmp.eq.s32.totalorder %s21, 1
    %p205 = por %p203, %p204
    %p207 = scmp.ne.s32.totalorder %s192, %s206
    %p208 = scmp.eq.s32.totalorder %s21, 0
    %p209 = por %p207, %p208
    %s211 = sadd.s32 %s210, 1
    %p214 = scmp.eq.s32.totalorder %s15, 1
    %p215 = scmp.ne.s32.totalorder %s210, %s212
    %p216 = scmp.eq.s32.totalorder %s15, 0
    %p217 = por %p215, %p216
    %p218 = scmp.ne.s32.totalorder %s210, %s212
    %p219 = scmp.eq.s32.totalorder %s20, 1
    %p220 = por %p218, %p219
    %p221 = scmp.ne.s32.totalorder %s212, %s213
    %p222 = scmp.eq.s32.totalorder %s20, 0
    %p223 = por %p221, %p222
    %p224 = scmp.ne.s32.totalorder %s212, %s213
    %p225 = scmp.eq.s32.totalorder %s21, 1
    %p226 = por %p224, %p225
    %p228 = scmp.ne.s32.totalorder %s213, %s227
    %p229 = scmp.eq.s32.totalorder %s21, 0
    %p230 = por %p228, %p229
    %s231 = ssub.s32 %s22, %s34
    %s232 = ssub.s32 %s23, %s30
    %s233 = sor.u32 %s231, %s232
    %p234 = scmp.eq.s32.totalorder %s233, 0
    %s236 = sadd.s32 %s235, 1
    %s237 = scalar_select %p234, %s235, %s236
    %p240 = pneg %p234
    %p241 = scmp.eq.s32.totalorder %s15, 1
    %p242 = por %p240, %p241
    %p243 = scmp.ne.s32.totalorder %s235, %s238
    %p244 = scmp.eq.s32.totalorder %s15, 0
    %p245 = por %p243, %p244
    %p246 = scmp.ne.s32.totalorder %s235, %s238
    %p247 = scmp.eq.s32.totalorder %s20, 1
    %p248 = por %p246, %p247
    %p249 = scmp.ne.s32.totalorder %s238, %s239
    %p250 = scmp.eq.s32.totalorder %s20, 0
    %p251 = por %p249, %p250
    %p252 = scmp.ne.s32.totalorder %s238, %s239
    %p253 = scmp.eq.s32.totalorder %s21, 1
    %p254 = por %p252, %p253
    %p256 = scmp.ne.s32.totalorder %s239, %s255
    %p257 = scmp.eq.s32.totalorder %s21, 0
    %p258 = por %p256, %p257
    %p259 = scmp.le.s32.totalorder 1, %s15
    %p260 = scmp.lt.s32.totalorder %s15, 3
    %p261 = pnand %p259, %p260
    %p262 = pneg %p261
    // Predicated region
    $region9: #{pixel_discriminator.3} parent=5 // pred_check
      _
    $region10: #{pixel_discriminator.3} parent=5 // pred_check_branch
      %264 = sbr.rel (%p261) target = $region12
    $region11: #{pixel_discriminator.3} parent=5 // pred_region
      %s265 = ssub.s32 %s15, 1
      // Predicated region
      $region13: #{pixel_discriminator.3} parent=11 // pred_check
        %p266 = pneg %p76
      $region14: #{pixel_discriminator.3} parent=11 // pred_check_branch
        %268 = sbr.rel (%p266) target = $region16
      $region15: #{pixel_discriminator.3} parent=11 // pred_region
        _
      $region16: #{pixel_discriminator.3} parent=11 // pred_fallthru
        _
      // Predicated region
      $region17: #{pixel_discriminator.3} parent=11 // pred_check
        %p269 = pneg %p97
      $region18: #{pixel_discriminator.3} parent=11 // pred_check_branch
        %271 = sbr.rel (%p269) target = $region20
      $region19: #{pixel_discriminator.3} parent=11 // pred_region
        _
      $region20: #{pixel_discriminator.3} parent=11 // pred_fallthru
        _
      // Predicated region
      $region21: #{pixel_discriminator.3} parent=11 // pred_check
        %p272 = pneg %p118
      $region22: #{pixel_discriminator.3} parent=11 // pred_check_branch
        %274 = sbr.rel (%p272) target = $region24
      $region23: #{pixel_discriminator.3} parent=11 // pred_region
        _
      $region24: #{pixel_discriminator.3} parent=11 // pred_fallthru
        _
      // Predicated region
      $region25: #{pixel_discriminator.3} parent=11 // pred_check
        %p275 = pneg %p139
      $region26: #{pixel_discriminator.3} parent=11 // pred_check_branch
        %277 = sbr.rel (%p275) target = $region28
      $region27: #{pixel_discriminator.3} parent=11 // pred_region
        _
      $region28: #{pixel_discriminator.3} parent=11 // pred_fallthru
        _
      // Predicated region
      $region29: #{pixel_discriminator.3} parent=11 // pred_check
        %p278 = pneg %p160
      $region30: #{pixel_discriminator.3} parent=11 // pred_check_branch
        %280 = sbr.rel (%p278) target = $region32
      $region31: #{pixel_discriminator.3} parent=11 // pred_region
        _
      $region32: #{pixel_discriminator.3} parent=11 // pred_fallthru
        _
      // Predicated region
      $region33: #{pixel_discriminator.3} parent=11 // pred_check
        %p281 = pneg %p181
      $region34: #{pixel_discriminator.3} parent=11 // pred_check_branch
        %283 = sbr.rel (%p281) target = $region36
      $region35: #{pixel_discriminator.3} parent=11 // pred_region
        _
      $region36: #{pixel_discriminator.3} parent=11 // pred_fallthru
        _
      // Predicated region
      $region37: #{pixel_discriminator.3} parent=11 // pred_check
        %p284 = pneg %p202
      $region38: #{pixel_discriminator.3} parent=11 // pred_check_branch
        %286 = sbr.rel (%p284) target = $region40
      $region39: #{pixel_discriminator.3} parent=11 // pred_region
        _
      $region40: #{pixel_discriminator.3} parent=11 // pred_fallthru
        _
      // Predicated region
      $region41: #{pixel_discriminator.3} parent=11 // pred_check
        %p287 = pneg %p223
      $region42: #{pixel_discriminator.3} parent=11 // pred_check_branch
        %289 = sbr.rel (%p287) target = $region44
      $region43: #{pixel_discriminator.3} parent=11 // pred_region
        _
      $region44: #{pixel_discriminator.3} parent=11 // pred_fallthru
        _
    $region12: #{pixel_discriminator.3} parent=5 // pred_fallthru
      _
    %p290 = scmp.lt.s32.totalorder %s15, 2
    // Predicated region
    $region45: #{pixel_discriminator.3} parent=5 // pred_check
      %p291 = pneg %p290
    $region46: #{pixel_discriminator.3} parent=5 // pred_check_branch
      %293 = sbr.rel (%p291) target = $region48
    $region47: #{pixel_discriminator.3} parent=5 // pred_region
      // Predicated region
      $region49: #{pixel_discriminator.3} parent=47 // pred_check
        %p294 = pneg %p49
      $region50: #{pixel_discriminator.3} parent=47 // pred_check_branch
        %296 = sbr.rel (%p294) target = $region52
      $region51: #{pixel_discriminator.3} parent=47 // pred_region
        %s297 = smul.u32 2, %s23
        %p298 = scmp.lt.s32.totalorder %s22, 1
        %s299 = scalar_select %p298, %s22, 1
        %p300 = scmp.lt.s32.totalorder %s297, 1
        %s301 = scalar_select %p300, %s297, 1
        %s302 = smul.addr %s299, 2
        %s303 = sadd.s32 %s301, %s302
        %s304 = smul.addr %s303, 4
        %s305 = scalar_lea.vmem %s0, %s304
        %s306 = smul.u32 2, %s23
      $region52: #{pixel_discriminator.3} parent=47 // pred_fallthru
        _
    $region48: #{pixel_discriminator.3} parent=5 // pred_fallthru
      _
    %p307 = scmp.le.s32.totalorder 1, %s15
    %p308 = scmp.lt.s32.totalorder %s15, 3
    %p309 = pnand %p307, %p308
    %p310 = pneg %p309
    // Predicated region
    $region53: #{pixel_discriminator.3} parent=5 // pred_check
      _
    $region54: #{pixel_discriminator.3} parent=5 // pred_check_branch
      %312 = sbr.rel (%p309) target = $region56
    $region55: #{pixel_discriminator.3} parent=5 // pred_region
      %s313 = ssub.s32 %s15, 1
      %s314 = smul.u32 2, %s25
      %p315 = scmp.lt.s32.totalorder %s24, 1
      %s316 = scalar_select %p315, %s24, 1
      %p317 = scmp.lt.s32.totalorder %s314, 1
      %s318 = scalar_select %p317, %s314, 1
      %s319 = smul.addr %s316, 2
      %s320 = sadd.s32 %s318, %s319
      %s321 = smul.addr %s320, 4
      %s322 = scalar_lea.vmem %s0, %s321
      %p323 = pneg %p55
      %p324 = pneg %p52
      %p325 = pneg %p76
      %p326 = pneg %p73
      %p327 = pneg %p97
      %p328 = pneg %p94
      %p329 = pneg %p118
      %p330 = pneg %p115
      %p331 = pneg %p139
      %p332 = pneg %p136
      %p333 = pneg %p160
      %p334 = pneg %p157
      %p335 = pneg %p181
      %p336 = pneg %p178
      %p337 = pneg %p202
      %p338 = pneg %p199
      %p339 = pneg %p223
      %p340 = pneg %p220
      %p341 = pneg %p251
      %p342 = pneg %p248
      %s343 = smul.u32 2, %s25
      %p344 = scmp.lt.s32.totalorder %s24, 1
      %s345 = scalar_select %p344, %s24, 1
      %p346 = scmp.lt.s32.totalorder %s343, 1
      %s347 = scalar_select %p346, %s343, 1
      %s348 = smul.addr %s345, 2
      %s349 = sadd.s32 %s347, %s348
      %s350 = smul.addr %s349, 4
      %s351 = scalar_lea.vmem %s9, %s350
      %s352 = smul.u32 2, %s25
      %p353 = scmp.lt.s32.totalorder %s24, 1
      %s354 = scalar_select %p353, %s24, 1
      %p355 = scmp.lt.s32.totalorder %s352, 1
      %s356 = scalar_select %p355, %s352, 1
      %s357 = smul.addr %s354, 2
      %s358 = sadd.s32 %s356, %s357
      %s359 = smul.addr %s358, 4
      %s360 = scalar_lea.vmem %s0, %s359
      %s361 = smul.u32 2, %s25
      %s362 = smul.u32 2, %s25
      %p363 = scmp.lt.s32.totalorder %s24, 1
      %s364 = scalar_select %p363, %s24, 1
      %p365 = scmp.lt.s32.totalorder %s362, 1
      %s366 = scalar_select %p365, %s362, 1
      %s367 = smul.addr %s364, 2
      %s368 = sadd.s32 %s366, %s367
      %s369 = smul.addr %s368, 4
      %s370 = scalar_lea.vmem %s9, %s369
      %s371 = smul.u32 2, %s25
      %v372 = vld [vmem:[%s360] sm:$0xff]
      %v373 = vld [vmem:[%s1] sm:$0xff]
      %v374 = vld [vmem:[%s2] sm:$0xff]
      %376 = vset.pattern.permute.xlu0 0
      %377 = vperm.xlu0 %376, %v374
      %v378 = vpop.permute.xlu0 %377
      %v381 = vcombine.high %v372, %v372
      %vm382 = vcmask 31744
      %v384 = vsel %vm382, %v373, 0
      %vm386 = vcmask 1043456
      %v387 = vsel %vm386, %v372, 0
      %v389 = vsel %vm386, %v381, 0
      %391 = vmatprep.subr.mxu0 %v389
      %392 = vmatpush1.msra.mxu0 %v387
      %393 = vmatprep.subr.mxu0 0.0
      %394 = vmatpush1.msra.mxu0 0.0
      %395 = vmatprep.subr.mxu0 0.0
      %396 = vmatpush1.msra.mxu0 0.0
      %397 = vmatprep.subr.mxu0 0.0
      %398 = vmatpush1.msra.mxu0 0.0
      %399 = vmatprep.subr.mxu0 0.0
      %400 = vmatpush1.msra.mxu0 0.0
      %401 = vmatprep.subr.mxu0 0.0
      %402 = vmatpush1.msra.mxu0 0.0
      %403 = vmatprep.subr.mxu0 0.0
      %404 = vmatpush1.msra.mxu0 0.0
      %405 = vmatprep.subr.mxu0 0.0
      %406 = vmatpush1.msra.mxu0 0.0
      %407 = vmatprep.subr.mxu0 0.0
      %408 = vmatpush1.msra.mxu0 0.0
      %409 = vmatprep.subr.mxu0 0.0
      %410 = vmatpush1.msra.mxu0 0.0
      %411 = vmatprep.subr.mxu0 0.0
      %412 = vmatpush1.msra.mxu0 0.0
      %413 = vmatprep.subr.mxu0 0.0
      %414 = vmatpush1.msra.mxu0 0.0
      %415 = vmatprep.subr.mxu0 0.0
      %416 = vmatpush1.msra.mxu0 0.0
      %417 = vmatprep.subr.mxu0 0.0
      %418 = vmatpush1.msra.mxu0 0.0
      %419 = vmatprep.subr.mxu0 0.0
      %420 = vmatpush1.msra.mxu0 0.0
      %421 = vmatprep.subr.mxu0 0.0
      %422 = vmatpush1.msra.mxu0 0.0
      %423 = vmatprep.subr.mxu0 0.0
      %424 = vmatpush1.msra.mxu0 0.0
      %425 = vmatprep.subr.mxu0 0.0
      %426 = vmatpush1.msra.mxu0 0.0
      %427 = vmatprep.subr.mxu0 0.0
      %428 = vmatpush1.msra.mxu0 0.0
      %429 = vmatprep.subr.mxu0 0.0
      %430 = vmatpush1.msra.mxu0 0.0
      %431 = vmatprep.subr.mxu0 0.0
      %432 = vmatpush1.msra.mxu0 0.0
      %433 = vmatprep.subr.mxu0 0.0
      %434 = vmatpush1.msra.mxu0 0.0
      %435 = vmatprep.subr.mxu0 0.0
      %436 = vmatpush1.msra.mxu0 0.0
      %437 = vmatprep.subr.mxu0 0.0
      %438 = vmatpush1.msra.mxu0 0.0
      %439 = vmatprep.subr.mxu0 0.0
      %440 = vmatpush1.msra.mxu0 0.0
      %441 = vmatprep.subr.mxu0 0.0
      %442 = vmatpush1.msra.mxu0 0.0
      %443 = vmatprep.subr.mxu0 0.0
      %444 = vmatpush1.msra.mxu0 0.0
      %445 = vmatprep.subr.mxu0 0.0
      %446 = vmatpush1.msra.mxu0 0.0
      %447 = vmatprep.subr.mxu0 0.0
      %448 = vmatpush1.msra.mxu0 0.0
      %449 = vmatprep.subr.mxu0 0.0
      %450 = vmatpush1.msra.mxu0 0.0
      %451 = vmatprep.subr.mxu0 0.0
      %452 = vmatpush1.msra.mxu0 0.0
      %453 = vmatprep.subr.mxu0 0.0
      %454 = vmatpush1.msra.mxu0 0.0
      %455 = vmatprep.mubr.f32.mxu0 0.0
      %456 = vmatmul.mubr.f32.gmra.mrb[0].mxu0 %v384
      %v457 = vpop.f32.mrb[0].mxu0
      %v458 = vadd.f32 %v378, %v457
      %v459 = vpop.f32.mrb[0].mxu0
      %v460 = vadd.f32 %v378, %v459
      %461 = vdwg.mxu0
      %vm462 = vcmp.ge.f32.partialorder %v458, 0.0
      %vm463 = vcmp.ge.f32.partialorder %v460, 0.0
      %v464 = vmul.f32 %v458, 0.2
      %v465 = vmul.f32 %v460, 0.2
      %v466 = vsel %vm462, %v458, %v464
      %v467 = vsel %vm463, %v460, %v465
      %v468 = vld [vmem:[%s3] sm:$0xff]
      %v469 = vld [vmem:[%s3 + $0x8] sm:$0xff]
      %v470 = vld [vmem:[%s4] sm:$0xff]
      %v471 = vld [vmem:[%s4 + $0x8] sm:$0xff]
      %473 = vset.pattern.permute.xlu0 0
      %474 = vperm.xlu0 %473, %v470
      %v475 = vpop.permute.xlu0 %474
      %478 = vset.pattern.permute.xlu0 0
      %479 = vperm.xlu0 %478, %v471
      %v480 = vpop.permute.xlu0 %479
      %vm482 = vcmask 64512
      %v484 = vsel %vm482, %v468, 0
      %v487 = vsel %vm482, %v469, 0
      %489 = vmatprep.subr.mxu0 %v467
      %490 = vmatpush1.msra.mxu0 %v466
      %491 = vmatprep.subr.mxu0 0.0
      %492 = vmatpush1.msra.mxu0 0.0
      %493 = vmatprep.subr.mxu0 0.0
      %494 = vmatpush1.msra.mxu0 0.0
      %495 = vmatprep.subr.mxu0 0.0
      %496 = vmatpush1.msra.mxu0 0.0
      %497 = vmatprep.subr.mxu0 0.0
      %498 = vmatpush1.msra.mxu0 0.0
      %499 = vmatprep.subr.mxu0 0.0
      %500 = vmatpush1.msra.mxu0 0.0
      %501 = vmatprep.subr.mxu0 0.0
      %502 = vmatpush1.msra.mxu0 0.0
      %503 = vmatprep.subr.mxu0 0.0
      %504 = vmatpush1.msra.mxu0 0.0
      %505 = vmatprep.subr.mxu0 0.0
      %506 = vmatpush1.msra.mxu0 0.0
      %507 = vmatprep.subr.mxu0 0.0
      %508 = vmatpush1.msra.mxu0 0.0
      %509 = vmatprep.subr.mxu0 0.0
      %510 = vmatpush1.msra.mxu0 0.0
      %511 = vmatprep.subr.mxu0 0.0
      %512 = vmatpush1.msra.mxu0 0.0
      %513 = vmatprep.subr.mxu0 0.0
      %514 = vmatpush1.msra.mxu0 0.0
      %515 = vmatprep.subr.mxu0 0.0
      %516 = vmatpush1.msra.mxu0 0.0
      %517 = vmatprep.subr.mxu0 0.0
      %518 = vmatpush1.msra.mxu0 0.0
      %519 = vmatprep.subr.mxu0 0.0
      %520 = vmatpush1.msra.mxu0 0.0
      %521 = vmatprep.subr.mxu0 0.0
      %522 = vmatpush1.msra.mxu0 0.0
      %523 = vmatprep.subr.mxu0 0.0
      %524 = vmatpush1.msra.mxu0 0.0
      %525 = vmatprep.subr.mxu0 0.0
      %526 = vmatpush1.msra.mxu0 0.0
      %527 = vmatprep.subr.mxu0 0.0
      %528 = vmatpush1.msra.mxu0 0.0
      %529 = vmatprep.subr.mxu0 0.0
      %530 = vmatpush1.msra.mxu0 0.0
      %531 = vmatprep.subr.mxu0 0.0
      %532 = vmatpush1.msra.mxu0 0.0
      %533 = vmatprep.subr.mxu0 0.0
      %534 = vmatpush1.msra.mxu0 0.0
      %535 = vmatprep.subr.mxu0 0.0
      %536 = vmatpush1.msra.mxu0 0.0
      %537 = vmatprep.subr.mxu0 0.0
      %538 = vmatpush1.msra.mxu0 0.0
      %539 = vmatprep.subr.mxu0 0.0
      %540 = vmatpush1.msra.mxu0 0.0
      %541 = vmatprep.subr.mxu0 0.0
      %542 = vmatpush1.msra.mxu0 0.0
      %543 = vmatprep.subr.mxu0 0.0
      %544 = vmatpush1.msra.mxu0 0.0
      %545 = vmatprep.subr.mxu0 0.0
      %546 = vmatpush1.msra.mxu0 0.0
      %547 = vmatprep.subr.mxu0 0.0
      %548 = vmatpush1.msra.mxu0 0.0
      %549 = vmatprep.subr.mxu0 0.0
      %550 = vmatpush1.msra.mxu0 0.0
      %551 = vmatprep.subr.mxu0 0.0
      %552 = vmatpush1.msra.mxu0 0.0
      %553 = vmatprep.mubr.f32.mxu0 0.0
      %554 = vmatmul.mubr.f32.gmra.mrb[0].mxu0 %v484
      %v555 = vpop.f32.mrb[0].mxu0
      %v556 = vadd.f32 %v475, %v555
      %v557 = vpop.f32.mrb[0].mxu0
      %v558 = vadd.f32 %v475, %v557
      %559 = vmatprep.mubr.f32.mxu0 0.0
      %560 = vmatmul.mubr.f32.gmra.mrb[0].mxu0 %v487
      %v561 = vpop.f32.mrb[0].mxu0
      %v562 = vadd.f32 %v480, %v561
      %v563 = vpop.f32.mrb[0].mxu0
      %v564 = vadd.f32 %v480, %v563
      %565 = vdwg.mxu0
      %v566 = vld [vmem:[%s5] sm:$0xff]
      %v567 = vld [vmem:[%s5 + $0x8] sm:$0xff]
      %569 = vset.pattern.permute.xlu0 0
      %570 = vperm.xlu0 %569, %v566
      %v571 = vpop.permute.xlu0 %570
      %574 = vset.pattern.permute.xlu0 0
      %575 = vperm.xlu0 %574, %v567
      %v576 = vpop.permute.xlu0 %575
      %v578 = vmul.f32 %v556, %v571
      %v579 = vmul.f32 %v558, %v571
      %v580 = vmul.f32 %v562, %v576
      %v581 = vmul.f32 %v564, %v576
      %v582 = vld [vmem:[%s6] sm:$0xff]
      %v583 = vld [vmem:[%s6 + $0x8] sm:$0xff]
      %585 = vset.pattern.permute.xlu0 0
      %586 = vperm.xlu0 %585, %v582
      %v587 = vpop.permute.xlu0 %586
      %590 = vset.pattern.permute.xlu0 0
      %591 = vperm.xlu0 %590, %v583
      %v592 = vpop.permute.xlu0 %591
      %v594 = vadd.f32 %v578, %v587
      %v595 = vadd.f32 %v579, %v587
      %v596 = vadd.f32 %v580, %v592
      %v597 = vadd.f32 %v581, %v592
      %vm598 = vcmp.ge.f32.partialorder %v594, 0.0
      %vm599 = vcmp.ge.f32.partialorder %v595, 0.0
      %vm600 = vcmp.ge.f32.partialorder %v596, 0.0
      %vm601 = vcmp.ge.f32.partialorder %v597, 0.0
      %v602 = vmul.f32 %v594, 0.2
      %v603 = vmul.f32 %v595, 0.2
      %v604 = vmul.f32 %v596, 0.2
      %v605 = vmul.f32 %v597, 0.2
      %v606 = vsel %vm598, %v594, %v602
      %v607 = vsel %vm599, %v595, %v603
      %v608 = vsel %vm600, %v596, %v604
      %v609 = vsel %vm601, %v597, %v605
      %v610 = vld [vmem:[%s7] sm:$0xf]
      %v611 = vld [vmem:[%s8] sm:$0xf]
      %613 = vset.pattern.permute.xlu0 0
      %614 = vperm.xlu0 %613, %v611
      %v615 = vpop.permute.xlu0 %614
      %vm617 = vcmask 130048
      %v619 = vsel %vm617, %v610, 0
      %621 = vmatprep.subr.mxu0 %v607
      %622 = vmatpush1.msra.mxu0 %v606
      %623 = vmatprep.subr.mxu0 %v609
      %624 = vmatpush1.msra.mxu0 %v608
      %625 = vmatprep.subr.mxu0 0.0
      %626 = vmatpush1.msra.mxu0 0.0
      %627 = vmatprep.subr.mxu0 0.0
      %628 = vmatpush1.msra.mxu0 0.0
      %629 = vmatprep.subr.mxu0 0.0
      %630 = vmatpush1.msra.mxu0 0.0
      %631 = vmatprep.subr.mxu0 0.0
      %632 = vmatpush1.msra.mxu0 0.0
      %633 = vmatprep.subr.mxu0 0.0
      %634 = vmatpush1.msra.mxu0 0.0
      %635 = vmatprep.subr.mxu0 0.0
      %636 = vmatpush1.msra.mxu0 0.0
      %637 = vmatprep.subr.mxu0 0.0
      %638 = vmatpush1.msra.mxu0 0.0
      %639 = vmatprep.subr.mxu0 0.0
      %640 = vmatpush1.msra.mxu0 0.0
      %641 = vmatprep.subr.mxu0 0.0
      %642 = vmatpush1.msra.mxu0 0.0
      %643 = vmatprep.subr.mxu0 0.0
      %644 = vmatpush1.msra.mxu0 0.0
      %645 = vmatprep.subr.mxu0 0.0
      %646 = vmatpush1.msra.mxu0 0.0
      %647 = vmatprep.subr.mxu0 0.0
      %648 = vmatpush1.msra.mxu0 0.0
      %649 = vmatprep.subr.mxu0 0.0
      %650 = vmatpush1.msra.mxu0 0.0
      %651 = vmatprep.subr.mxu0 0.0
      %652 = vmatpush1.msra.mxu0 0.0
      %653 = vmatprep.subr.mxu0 0.0
      %654 = vmatpush1.msra.mxu0 0.0
      %655 = vmatprep.subr.mxu0 0.0
      %656 = vmatpush1.msra.mxu0 0.0
      %657 = vmatprep.subr.mxu0 0.0
      %658 = vmatpush1.msra.mxu0 0.0
      %659 = vmatprep.subr.mxu0 0.0
      %660 = vmatpush1.msra.mxu0 0.0
      %661 = vmatprep.subr.mxu0 0.0
      %662 = vmatpush1.msra.mxu0 0.0
      %663 = vmatprep.subr.mxu0 0.0
      %664 = vmatpush1.msra.mxu0 0.0
      %665 = vmatprep.subr.mxu0 0.0
      %666 = vmatpush1.msra.mxu0 0.0
      %667 = vmatprep.subr.mxu0 0.0
      %668 = vmatpush1.msra.mxu0 0.0
      %669 = vmatprep.subr.mxu0 0.0
      %670 = vmatpush1.msra.mxu0 0.0
      %671 = vmatprep.subr.mxu0 0.0
      %672 = vmatpush1.msra.mxu0 0.0
      %673 = vmatprep.subr.mxu0 0.0
      %674 = vmatpush1.msra.mxu0 0.0
      %675 = vmatprep.subr.mxu0 0.0
      %676 = vmatpush1.msra.mxu0 0.0
      %677 = vmatprep.subr.mxu0 0.0
      %678 = vmatpush1.msra.mxu0 0.0
      %679 = vmatprep.subr.mxu0 0.0
      %680 = vmatpush1.msra.mxu0 0.0
      %681 = vmatprep.subr.mxu0 0.0
      %682 = vmatpush1.msra.mxu0 0.0
      %683 = vmatprep.subr.mxu0 0.0
      %684 = vmatpush1.msra.mxu0 0.0
      %685 = vmatprep.mubr.f32.mxu0 0.0
      %686 = vmatmul.mubr.f32.gmra.mrb[0].mxu0 %v619
      %v687 = vpop.f32.mrb[0].mxu0
      %v688 = vadd.f32 %v615, %v687
      %v689 = vpop.f32.mrb[0].mxu0
      %v690 = vadd.f32 %v615, %v689
      %691 = vdwg.mxu0
      %v692 = vsub.f32 0.0, %v688
      %v693 = vsub.f32 0.0, %v690
      %v694 = vmul.f32 %v692, 1.442695
      %v695 = vpow.pop %v694
      %v696 = vmul.f32 %v693, 1.442695
      %v697 = vpow.pop %v696
      %v698 = vadd.f32 %v695, 1.0
      %v699 = vadd.f32 %v697, 1.0
      %v700 = vrcp.pop %v698
      %v701 = vrcp.pop %v699
      %v704 = vcombine.low %v700, %v701
      %706 = vst [vmem:[%s370] sm:$0xff] %v704
      %s707 = smul.u32 2, %s25
      %p708 = scmp.lt.s32.totalorder %s24, 1
      %s709 = scalar_select %p708, %s24, 1
      %p710 = scmp.lt.s32.totalorder %s707, 1
      %s711 = scalar_select %p710, %s707, 1
      %s712 = smul.addr %s709, 2
      %s713 = sadd.s32 %s711, %s712
      %s714 = smul.addr %s713, 4
      %s715 = scalar_lea.vmem %s9, %s714
      // Predicated region
      $region57: #{pixel_discriminator.3} parent=55 // pred_check
        %p716 = pneg %p248
      $region58: #{pixel_discriminator.3} parent=55 // pred_check_branch
        %718 = sbr.rel (%p716) target = $region60
      $region59: #{pixel_discriminator.3} parent=55 // pred_region
        %s719 = smul.u32 2, %s25
      $region60: #{pixel_discriminator.3} parent=55 // pred_fallthru
        _
    $region56: #{pixel_discriminator.3} parent=5 // pred_fallthru
      _
    %p720 = scmp.le.s32.totalorder 2, %s15
    // Predicated region
    $region61: #{pixel_discriminator.3} parent=5 // pred_check
      %p721 = pneg %p720
    $region62: #{pixel_discriminator.3} parent=5 // pred_check_branch
      %723 = sbr.rel (%p721) target = $region64
    $region63: #{pixel_discriminator.3} parent=5 // pred_region
      %s724 = ssub.s32 %s15, 2
      // Predicated region
      $region65: #{pixel_discriminator.3} parent=63 // pred_check
        %p725 = pneg %p254
      $region66: #{pixel_discriminator.3} parent=63 // pred_check_branch
        %727 = sbr.rel (%p725) target = $region68
      $region67: #{pixel_discriminator.3} parent=63 // pred_region
        %s728 = smul.u32 2, %s27
        %p729 = scmp.lt.s32.totalorder %s26, 1
        %s730 = scalar_select %p729, %s26, 1
        %p731 = scmp.lt.s32.totalorder %s728, 1
        %s732 = scalar_select %p731, %s728, 1
        %s733 = smul.addr %s730, 2
        %s734 = sadd.s32 %s732, %s733
        %s735 = smul.addr %s734, 4
        %s736 = scalar_lea.vmem %s9, %s735
      $region68: #{pixel_discriminator.3} parent=63 // pred_fallthru
        _
    $region64: #{pixel_discriminator.3} parent=5 // pred_fallthru
      _
  $region6: #{pixel_discriminator.3} parent=0 // loop_footer
    %s19 = sadd.s32 1, %s15
  $region7: #{pixel_discriminator.3} parent=0 // loop_footer_branch
    %14 = sbr.rel target = $region3
  $region8: #{pixel_discriminator.3} parent=0 // loop_exit
    _

</llo_original>
